<compile_context>
chip_gen: v5e
topology: v5e:2x2
jax: 0.10.0
libtpu: 0.0.40
codegen_flags: <defaults>
</compile_context>

<pallas_src>
import functools
import math

import jax
import jax.numpy as jnp
from jax.experimental import pallas as pl
from jax.experimental.pallas import tpu as pltpu  # noqa: F401  (TPU backend)

# ------------------------- model configuration (small) -------------------------
IMG = 16          # img_size
PS = 8            # patch_size
CIN = 3           # in_chans
EMBED = 32        # embed_dim
DEPTH = 2         # depth
HEADS = 4         # num_heads
HEAD_DIM = EMBED // HEADS
MLP_HIDDEN = int(EMBED * 4.0)
NUM_CLASSES = 10
LN_EPS = 1e-5     # nn.LayerNorm default

NUM_PATCHES = (IMG // PS) ** 2      # 4
SEQ = NUM_PATCHES + 1               # 5 = cls + patches
SEQ_PAD = 8                         # pad token axis to a sublane multiple
PATCH_DIM = CIN * PS * PS           # 192
HEAD_PAD = 128                      # lane-dense classifier output width

# weight refs the kernel consumes per transformer block (q pre-scaled)
KERNEL_BLOCK_KEYS = ('ln1w', 'ln1b', 'qkvw_s', 'projw', 'projb',
                     'ln2w', 'ln2b', 'fc1w', 'fc1b', 'fc2w', 'fc2b')


# ------------------------------ shared math helpers ------------------------------
def _gelu(x):
    # tanh-approximation GELU (one EUP tanh); |err| vs exact erf GELU < ~1e-3.
    c = math.sqrt(2.0 / math.pi)
    return 0.5 * x * (1.0 + jnp.tanh(c * (x + 0.044715 * x * x * x)))


def _layernorm(x, w, b):
    mu = jnp.mean(x, axis=-1, keepdims=True)
    var = jnp.mean((x - mu) ** 2, axis=-1, keepdims=True)
    return (x - mu) * jax.lax.rsqrt(var + LN_EPS) * w + b


# --------------------------------- fused Pallas kernel ---------------------------------
def vit_fused_kernel(patches_ref, base_ref, mask_ref, patchw_ref, *rest, batch):
    """Whole ViT forward for `batch` images, everything VMEM-resident.

    rest = [11 weight refs per block] * DEPTH + [norm_w, norm_b, head_w, head_b, out]
    """
    B = batch
    SP = SEQ_PAD
    nbp = len(KERNEL_BLOCK_KEYS)
    blk_refs = [rest[i * nbp:(i + 1) * nbp] for i in range(DEPTH)]
    normw_ref, normb_ref, headw_ref, headb_ref, o_ref = rest[DEPTH * nbp:]

    # Patch embed + cls token + sincos pos-embed in one matmul + add:
    # padded patch rows are zero, `base` carries cls+pos / patch_bias+pos rows.
    x = jnp.dot(patches_ref[...], patchw_ref[...],
                preferred_element_type=jnp.float32) + base_ref[...]      # (B*SP, E)

    for d in range(DEPTH):
        (ln1w, ln1b, qkvw, projw, projb,
         ln2w, ln2b, fc1w, fc1b, fc2w, fc2b) = blk_refs[d]

        # ---- attention ----
        xn = _layernorm(x, ln1w[...], ln1b[...])
        # q columns of qkvw are pre-scaled by head_dim**-0.5 (qkv has no bias)
        qkv = jnp.dot(xn, qkvw[...], preferred_element_type=jnp.float32)  # (B*SP, 3E)

        # Stack (head, batch) groups on the sublane axis with group g = h*B + b:
        # for a fixed head the rows are already in (b, s) order, so each stack
        # is just HEADS lane-slices + one concat.
        q_stack = jnp.concatenate(
            [qkv[:, h * HEAD_DIM:(h + 1) * HEAD_DIM] for h in range(HEADS)],
            axis=0)                                                       # (H*B*SP, hd)
        k_stack = jnp.concatenate(
            [qkv[:, EMBED + h * HEAD_DIM:EMBED + (h + 1) * HEAD_DIM]
             for h in range(HEADS)], axis=0)
        v_stack = jnp.concatenate(
            [qkv[:, 2 * EMBED + h * HEAD_DIM:2 * EMBED + (h + 1) * HEAD_DIM]
             for h in range(HEADS)], axis=0)

        # one score matmul, one softmax, one context matmul for ALL heads & batches
        s = jax.lax.dot_general(q_stack, k_stack, (((1,), (1,)), ((), ())),
                                preferred_element_type=jnp.float32)      # (H*B*SP, H*B*SP)
        s = s + mask_ref[...]                 # block-diag + padded-key mask (0 / -1e30)
        s = s - jnp.max(s, axis=-1, keepdims=True)
        p = jnp.exp(s)
        p = p * pl.reciprocal(jnp.sum(p, axis=-1, keepdims=True), approx=True)
        ctx_stack = jnp.dot(p, v_stack, preferred_element_type=jnp.float32)  # (H*B*SP, hd)

        # un-stack: ctx[b*SP + s, h*hd:(h+1)*hd] = ctx_stack[(h*B + b)*SP + s]
        ctx = jnp.concatenate(
            [ctx_stack[h * B * SP:(h + 1) * B * SP] for h in range(HEADS)],
            axis=1)                                                       # (B*SP, E)

        x = x + jnp.dot(ctx, projw[...],
                        preferred_element_type=jnp.float32) + projb[...]

        # ---- MLP ----
        xn2 = _layernorm(x, ln2w[...], ln2b[...])
        h1 = _gelu(jnp.dot(xn2, fc1w[...],
                           preferred_element_type=jnp.float32) + fc1b[...])
        x = x + jnp.dot(h1, fc2w[...],
                        preferred_element_type=jnp.float32) + fc2b[...]

    # ---- final LayerNorm + classifier head on ALL rows (lane-dense 128-wide
    # store, no in-kernel single-row gathers); wrapper extracts cls rows.
    xn = _layernorm(x, normw_ref[...], normb_ref[...])
    o_ref[...] = jnp.dot(xn, headw_ref[...],
                         preferred_element_type=jnp.float32) + headb_ref[...]


# ----------------------------------- wrappers -----------------------------------
def make_attn_mask(batch):
    """Additive mask for the (head, batch) groups stacked on the sublane axis:
    0 where query/key share a group AND the key slot is a real token, else -1e30."""
    gs = batch * HEADS * SEQ_PAD
    idx = jnp.arange(gs)
    group = idx // SEQ_PAD
    pos = idx % SEQ_PAD
    allowed = (group[:, None] == group[None, :]) & (pos[None, :] < SEQ)
    return jnp.where(allowed, 0.0, -1e30).astype(jnp.float32)


def vit_forward(img, params):
    B = img.shape[0]
    hp, wp = IMG // PS, IMG // PS
    # patch extraction (layout plumbing only, stays in XLA)
    patches = (img.reshape(B, CIN, hp, PS, wp, PS)
                  .transpose(0, 2, 4, 1, 3, 5)
                  .reshape(B, hp * wp, PATCH_DIM))
    # slot 0 reserved for the cls token; slots SEQ..SEQ_PAD-1 are zero padding
    patches_padded = jnp.pad(
        patches, ((0, 0), (1, SEQ_PAD - 1 - NUM_PATCHES), (0, 0))
    ).reshape(B * SEQ_PAD, PATCH_DIM)
    base = jnp.tile(params['base'], (B, 1))                    # (B*SP, E)
    mask = make_attn_mask(B)

    args = [patches_padded, base, mask, params['patch_w']]
    for blk in params['blocks']:
        args += [blk[k] for k in KERNEL_BLOCK_KEYS]
    args += [params['norm_w'], params['norm_b'],
             params['head_w_pad'], params['head_b_pad']]

    logits_pad = pl.pallas_call(
        functools.partial(vit_fused_kernel, batch=B),
        out_shape=jax.ShapeDtypeStruct((B * SEQ_PAD, HEAD_PAD), jnp.float32),
    )(*args)
    # cls-token rows are at row b*SEQ_PAD; real classes are the first 10 lanes.
    return logits_pad.reshape(B, SEQ_PAD, HEAD_PAD)[:, 0, :NUM_CLASSES]


def sincos_pos_embedding(n_pos, dim):
    pos = jnp.arange(n_pos, dtype=jnp.float32)
    omega = jnp.arange(dim // 2, dtype=jnp.float32) / (dim / 2.0)
    omega = 1.0 / (10000.0 ** omega)
    sita = pos[:, None] * omega[None, :]
    pe = jnp.zeros((n_pos, dim), jnp.float32)
    pe = pe.at[:, 0::2].set(jnp.sin(sita))
    pe = pe.at[:, 1::2].set(jnp.cos(sita))
    return pe


def init_params(key):
    keys = iter(jax.random.split(key, 8 + 6 * DEPTH))
    p = {}
    # PatchEmbed: Conv2d(CIN, EMBED, kernel=PS, stride=PS) as a matmul
    conv_w = 0.02 * jax.random.normal(next(keys), (EMBED, CIN, PS, PS), jnp.float32)
    p['patch_w'] = conv_w.reshape(EMBED, PATCH_DIM).T                    # (P, E)
    p['patch_b'] = 0.02 * jax.random.normal(next(keys), (1, EMBED), jnp.float32)
    p['cls_token'] = 0.02 * jax.random.normal(next(keys), (1, 1, EMBED), jnp.float32)
    p['pos_embed'] = sincos_pos_embedding(SEQ, EMBED)                    # (S, E)

    # "base" rows folded into the fused kernel: row 0 = cls_token + pos[0],
    # rows 1..N = patch_bias + pos[s], padding rows (s >= SEQ) = 0.
    base = jnp.zeros((SEQ_PAD, EMBED), jnp.float32)
    base = base.at[0].set(p['cls_token'][0, 0] + p['pos_embed'][0])
    base = base.at[1:SEQ].set(p['patch_b'] + p['pos_embed'][1:SEQ])
    p['base'] = base

    scale = HEAD_DIM ** (-0.5)
    # fold the attention scale into the q columns of the (bias-free) QKV weight
    col_scale = jnp.concatenate(
        [jnp.full((1, EMBED), scale, jnp.float32),
         jnp.ones((1, 2 * EMBED), jnp.float32)], axis=1)

    blocks = []
    for _ in range(DEPTH):
        qkv_w = 0.02 * jax.random.normal(next(keys), (3 * EMBED, EMBED), jnp.float32)
        proj_w = 0.02 * jax.random.normal(next(keys), (EMBED, EMBED), jnp.float32)
        fc1_w = 0.02 * jax.random.normal(next(keys), (MLP_HIDDEN, EMBED), jnp.float32)
        fc2_w = 0.02 * jax.random.normal(next(keys), (EMBED, MLP_HIDDEN), jnp.float32)
        qkvw = qkv_w.T                                                   # (E, 3E)
        blocks.append({
            'ln1w': jnp.ones((1, EMBED), jnp.float32),
            'ln1b': jnp.zeros((1, EMBED), jnp.float32),
            'qkvw': qkvw,                                                # unscaled (reference)
            'qkvw_s': qkvw * col_scale,                                  # q pre-scaled (kernel)
            'projw': proj_w.T,                                           # (E, E)
            'projb': jnp.zeros((1, EMBED), jnp.float32),
            'ln2w': jnp.ones((1, EMBED), jnp.float32),
            'ln2b': jnp.zeros((1, EMBED), jnp.float32),
            'fc1w': fc1_w.T,                                             # (E, H)
            'fc1b': jnp.zeros((1, MLP_HIDDEN), jnp.float32),
            'fc2w': fc2_w.T,                                             # (H, E)
            'fc2b': jnp.zeros((1, EMBED), jnp.float32),
        })
    p['blocks'] = blocks

    p['norm_w'] = jnp.ones((1, EMBED), jnp.float32)
    p['norm_b'] = jnp.zeros((1, EMBED), jnp.float32)
    head_w = 0.02 * jax.random.normal(next(keys), (NUM_CLASSES, EMBED), jnp.float32)
    head_b = jnp.zeros((NUM_CLASSES,), jnp.float32)
    p['head_w'] = head_w.T                                               # (E, 10)
    p['head_b'] = head_b
    # zero-padded to 128 output lanes so the kernel's final store is unmasked
    p['head_w_pad'] = jnp.zeros((EMBED, HEAD_PAD), jnp.float32).at[:, :NUM_CLASSES].set(head_w.T)
    p['head_b_pad'] = jnp.zeros((1, HEAD_PAD), jnp.float32).at[0, :NUM_CLASSES].set(head_b)
    return p


# ---------------------------- pure-JAX reference (for check) ----------------------------
def vit_reference(img, params):
    hi = jax.lax.Precision.HIGHEST
    B = img.shape[0]
    hp, wp = IMG // PS, IMG // PS
    patches = (img.reshape(B, CIN, hp, PS, wp, PS)
                  .transpose(0, 2, 4, 1, 3, 5)
                  .reshape(B, hp * wp, PATCH_DIM))
    tokens = jnp.dot(patches, params['patch_w'], precision=hi) + params['patch_b']
    cls = jnp.broadcast_to(params['cls_token'], (B, 1, EMBED))
    x = jnp.concatenate([cls, tokens], axis=1) + params['pos_embed'][None]
    scale = HEAD_DIM ** (-0.5)
    for blk in params['blocks']:
        xn = _layernorm(x, blk['ln1w'], blk['ln1b'])
        qkv = jnp.einsum('bnd,de->bne', xn, blk['qkvw'], precision=hi)
        q = qkv[..., :EMBED].reshape(B, SEQ, HEADS, HEAD_DIM).transpose(0, 2, 1, 3)
        k = qkv[..., EMBED:2 * EMBED].reshape(B, SEQ, HEADS, HEAD_DIM).transpose(0, 2, 1, 3)
        v = qkv[..., 2 * EMBED:].reshape(B, SEQ, HEADS, HEAD_DIM).transpose(0, 2, 1, 3)
        att = jnp.einsum('bhqd,bhkd->bhqk', q * scale, k, precision=hi)
        att = jax.nn.softmax(att, axis=-1)
        ctx = jnp.einsum('bhqk,bhkd->bhqd', att, v, precision=hi)
        ctx = ctx.transpose(0, 2, 1, 3).reshape(B, SEQ, EMBED)
        x = x + jnp.einsum('bnd,de->bne', ctx, blk['projw'], precision=hi) + blk['projb']
        xn2 = _layernorm(x, blk['ln2w'], blk['ln2b'])
        h1 = _gelu(jnp.einsum('bnd,dh->bnh', xn2, blk['fc1w'], precision=hi) + blk['fc1b'])
        x = x + jnp.einsum('bnh,he->bne', h1, blk['fc2w'], precision=hi) + blk['fc2b']
    x = _layernorm(x, params['norm_w'], params['norm_b'])
    return jnp.dot(x[:, 0], params['head_w'], precision=hi) + params['head_b']


if __name__ == "__main__":
    key = jax.random.PRNGKey(0)
    k_params, k_img = jax.random.split(key)
    params = init_params(k_params)
    img = jax.random.normal(k_img, (2, CIN, IMG, IMG), jnp.float32)      # NCHW

    fwd = jax.jit(vit_forward)
    out = jax.block_until_ready(fwd(img, params))
    assert out.shape == (2, NUM_CLASSES), out.shape
    assert bool(jnp.all(jnp.isfinite(out)))

    ref = jax.block_until_ready(vit_reference(img, params))
    assert bool(jnp.allclose(out, ref, atol=5e-3, rtol=5e-2)), (
        float(jnp.max(jnp.abs(out - ref))))
    print("KERNEL_OK")
</pallas_src>

<mosaic_0001>
module attributes {stable_mosaic.version = 11 : i64} {
  func.func @vit_fused_kernel(%arg0: memref<16x192xf32, #tpu.memory_space<vmem>>, %arg1: memref<16x32xf32, #tpu.memory_space<vmem>>, %arg2: memref<64x64xf32, #tpu.memory_space<vmem>>, %arg3: memref<192x32xf32, #tpu.memory_space<vmem>>, %arg4: memref<1x32xf32, #tpu.memory_space<vmem>>, %arg5: memref<1x32xf32, #tpu.memory_space<vmem>>, %arg6: memref<32x96xf32, #tpu.memory_space<vmem>>, %arg7: memref<32x32xf32, #tpu.memory_space<vmem>>, %arg8: memref<1x32xf32, #tpu.memory_space<vmem>>, %arg9: memref<1x32xf32, #tpu.memory_space<vmem>>, %arg10: memref<1x32xf32, #tpu.memory_space<vmem>>, %arg11: memref<32x128xf32, #tpu.memory_space<vmem>>, %arg12: memref<1x128xf32, #tpu.memory_space<vmem>>, %arg13: memref<128x32xf32, #tpu.memory_space<vmem>>, %arg14: memref<1x32xf32, #tpu.memory_space<vmem>>, %arg15: memref<1x32xf32, #tpu.memory_space<vmem>>, %arg16: memref<1x32xf32, #tpu.memory_space<vmem>>, %arg17: memref<32x96xf32, #tpu.memory_space<vmem>>, %arg18: memref<32x32xf32, #tpu.memory_space<vmem>>, %arg19: memref<1x32xf32, #tpu.memory_space<vmem>>, %arg20: memref<1x32xf32, #tpu.memory_space<vmem>>, %arg21: memref<1x32xf32, #tpu.memory_space<vmem>>, %arg22: memref<32x128xf32, #tpu.memory_space<vmem>>, %arg23: memref<1x128xf32, #tpu.memory_space<vmem>>, %arg24: memref<128x32xf32, #tpu.memory_space<vmem>>, %arg25: memref<1x32xf32, #tpu.memory_space<vmem>>, %arg26: memref<1x32xf32, #tpu.memory_space<vmem>>, %arg27: memref<1x32xf32, #tpu.memory_space<vmem>>, %arg28: memref<32x128xf32, #tpu.memory_space<vmem>>, %arg29: memref<1x128xf32, #tpu.memory_space<vmem>>, %arg30: memref<16x128xf32, #tpu.memory_space<vmem>>) attributes {dimension_semantics = [], scalar_prefetch = 0 : i64, scratch_operands = 0 : i64, tpu.core_type = #tpu.core_type<tc>} {
    %c0 = arith.constant 0 : index
    %c0_0 = arith.constant 0 : index
    %0 = vector.load %arg0[%c0, %c0_0] : memref<16x192xf32, #tpu.memory_space<vmem>>, vector<16x192xf32>
    %c0_1 = arith.constant 0 : index
    %c0_2 = arith.constant 0 : index
    %1 = vector.load %arg3[%c0_1, %c0_2] : memref<192x32xf32, #tpu.memory_space<vmem>>, vector<192x32xf32>
    %cst = arith.constant dense<0.000000e+00> : vector<16x32xf32>
    %2 = tpu.matmul %0, %1, %cst {dimension_numbers = #tpu.dot_dimension_numbers<[1], [0], [0], [1], [0, 0, 1, 1], [], []>} : vector<16x192xf32>, vector<192x32xf32>, vector<16x32xf32> -> vector<16x32xf32>
    %c0_3 = arith.constant 0 : index
    %c0_4 = arith.constant 0 : index
    %3 = vector.load %arg1[%c0_3, %c0_4] : memref<16x32xf32, #tpu.memory_space<vmem>>, vector<16x32xf32>
    %4 = arith.addf %2, %3 : vector<16x32xf32>
    %c0_5 = arith.constant 0 : index
    %c0_6 = arith.constant 0 : index
    %5 = vector.load %arg4[%c0_5, %c0_6] : memref<1x32xf32, #tpu.memory_space<vmem>>, vector<1x32xf32>
    %c0_7 = arith.constant 0 : index
    %c0_8 = arith.constant 0 : index
    %6 = vector.load %arg5[%c0_7, %c0_8] : memref<1x32xf32, #tpu.memory_space<vmem>>, vector<1x32xf32>
    %cst_9 = arith.constant dense<0.000000e+00> : vector<16xf32>
    %7 = vector.multi_reduction <add>, %4, %cst_9 [1] : vector<16x32xf32> to vector<16xf32>
    %8 = vector.shape_cast %7 : vector<16xf32> to vector<16x1xf32>
    %cst_10 = arith.constant 3.200000e+01 : f32
    %9 = vector.broadcast %cst_10 : f32 to vector<16x1xf32>
    %10 = arith.divf %8, %9 : vector<16x1xf32>
    %11 = vector.broadcast %10 : vector<16x1xf32> to vector<16x32xf32>
    %12 = arith.subf %4, %11 : vector<16x32xf32>
    %13 = arith.mulf %12, %12 : vector<16x32xf32>
    %cst_11 = arith.constant dense<0.000000e+00> : vector<16xf32>
    %14 = vector.multi_reduction <add>, %13, %cst_11 [1] : vector<16x32xf32> to vector<16xf32>
    %15 = vector.shape_cast %14 : vector<16xf32> to vector<16x1xf32>
    %cst_12 = arith.constant 3.200000e+01 : f32
    %16 = vector.broadcast %cst_12 : f32 to vector<16x1xf32>
    %17 = arith.divf %15, %16 : vector<16x1xf32>
    %18 = vector.broadcast %10 : vector<16x1xf32> to vector<16x32xf32>
    %19 = arith.subf %4, %18 : vector<16x32xf32>
    %cst_13 = arith.constant 9.99999974E-6 : f32
    %20 = vector.broadcast %cst_13 : f32 to vector<16x1xf32>
    %21 = arith.addf %17, %20 : vector<16x1xf32>
    %22 = math.rsqrt %21 : vector<16x1xf32>
    %23 = vector.broadcast %22 : vector<16x1xf32> to vector<16x32xf32>
    %24 = arith.mulf %19, %23 : vector<16x32xf32>
    %25 = vector.broadcast %5 : vector<1x32xf32> to vector<16x32xf32>
    %26 = arith.mulf %24, %25 : vector<16x32xf32>
    %27 = vector.broadcast %6 : vector<1x32xf32> to vector<16x32xf32>
    %28 = arith.addf %26, %27 : vector<16x32xf32>
    %c0_14 = arith.constant 0 : index
    %c0_15 = arith.constant 0 : index
    %29 = vector.load %arg6[%c0_14, %c0_15] : memref<32x96xf32, #tpu.memory_space<vmem>>, vector<32x96xf32>
    %cst_16 = arith.constant dense<0.000000e+00> : vector<16x96xf32>
    %30 = tpu.matmul %28, %29, %cst_16 {dimension_numbers = #tpu.dot_dimension_numbers<[1], [0], [0], [1], [0, 0, 1, 1], [], []>} : vector<16x32xf32>, vector<32x96xf32>, vector<16x96xf32> -> vector<16x96xf32>
    %31 = vector.extract_strided_slice %30 {offsets = [0, 0], sizes = [16, 8], strides = [1, 1]} : vector<16x96xf32> to vector<16x8xf32>
    %32 = vector.extract_strided_slice %30 {offsets = [0, 8], sizes = [16, 8], strides = [1, 1]} : vector<16x96xf32> to vector<16x8xf32>
    %33 = vector.extract_strided_slice %30 {offsets = [0, 16], sizes = [16, 8], strides = [1, 1]} : vector<16x96xf32> to vector<16x8xf32>
    %34 = vector.extract_strided_slice %30 {offsets = [0, 24], sizes = [16, 8], strides = [1, 1]} : vector<16x96xf32> to vector<16x8xf32>
    %35 = tpu.concatenate %31, %32, %33, %34 in 0 : vector<16x8xf32>, vector<16x8xf32>, vector<16x8xf32>, vector<16x8xf32> -> vector<64x8xf32>
    %36 = vector.extract_strided_slice %30 {offsets = [0, 32], sizes = [16, 8], strides = [1, 1]} : vector<16x96xf32> to vector<16x8xf32>
    %37 = vector.extract_strided_slice %30 {offsets = [0, 40], sizes = [16, 8], strides = [1, 1]} : vector<16x96xf32> to vector<16x8xf32>
    %38 = vector.extract_strided_slice %30 {offsets = [0, 48], sizes = [16, 8], strides = [1, 1]} : vector<16x96xf32> to vector<16x8xf32>
    %39 = vector.extract_strided_slice %30 {offsets = [0, 56], sizes = [16, 8], strides = [1, 1]} : vector<16x96xf32> to vector<16x8xf32>
    %40 = tpu.concatenate %36, %37, %38, %39 in 0 : vector<16x8xf32>, vector<16x8xf32>, vector<16x8xf32>, vector<16x8xf32> -> vector<64x8xf32>
    %41 = vector.extract_strided_slice %30 {offsets = [0, 64], sizes = [16, 8], strides = [1, 1]} : vector<16x96xf32> to vector<16x8xf32>
    %42 = vector.extract_strided_slice %30 {offsets = [0, 72], sizes = [16, 8], strides = [1, 1]} : vector<16x96xf32> to vector<16x8xf32>
    %43 = vector.extract_strided_slice %30 {offsets = [0, 80], sizes = [16, 8], strides = [1, 1]} : vector<16x96xf32> to vector<16x8xf32>
    %44 = vector.extract_strided_slice %30 {offsets = [0, 88], sizes = [16, 8], strides = [1, 1]} : vector<16x96xf32> to vector<16x8xf32>
    %45 = tpu.concatenate %41, %42, %43, %44 in 0 : vector<16x8xf32>, vector<16x8xf32>, vector<16x8xf32>, vector<16x8xf32> -> vector<64x8xf32>
    %cst_17 = arith.constant dense<0.000000e+00> : vector<64x64xf32>
    %46 = tpu.matmul %35, %40, %cst_17 {dimension_numbers = #tpu.dot_dimension_numbers<[1], [1], [0], [0], [0, 0, 1, 0], [], []>} : vector<64x8xf32>, vector<64x8xf32>, vector<64x64xf32> -> vector<64x64xf32>
    %c0_18 = arith.constant 0 : index
    %c0_19 = arith.constant 0 : index
    %47 = vector.load %arg2[%c0_18, %c0_19] : memref<64x64xf32, #tpu.memory_space<vmem>>, vector<64x64xf32>
    %48 = arith.addf %46, %47 : vector<64x64xf32>
    %cst_20 = arith.constant dense<0xFF800000> : vector<64xf32>
    %49 = vector.multi_reduction <maximumf>, %48, %cst_20 [1] : vector<64x64xf32> to vector<64xf32>
    %50 = vector.shape_cast %49 : vector<64xf32> to vector<64x1xf32>
    %51 = vector.broadcast %50 : vector<64x1xf32> to vector<64x64xf32>
    %52 = arith.subf %48, %51 : vector<64x64xf32>
    %53 = math.exp %52 : vector<64x64xf32>
    %cst_21 = arith.constant dense<0.000000e+00> : vector<64xf32>
    %54 = vector.multi_reduction <add>, %53, %cst_21 [1] : vector<64x64xf32> to vector<64xf32>
    %55 = vector.shape_cast %54 : vector<64xf32> to vector<64x1xf32>
    %56 = tpu.reciprocal %55 {approx = true} : vector<64x1xf32> -> vector<64x1xf32>
    %57 = vector.broadcast %56 : vector<64x1xf32> to vector<64x64xf32>
    %58 = arith.mulf %53, %57 : vector<64x64xf32>
    %cst_22 = arith.constant dense<0.000000e+00> : vector<64x8xf32>
    %59 = tpu.matmul %58, %45, %cst_22 {dimension_numbers = #tpu.dot_dimension_numbers<[1], [0], [0], [1], [0, 0, 1, 1], [], []>} : vector<64x64xf32>, vector<64x8xf32>, vector<64x8xf32> -> vector<64x8xf32>
    %60 = vector.extract_strided_slice %59 {offsets = [0, 0], sizes = [16, 8], strides = [1, 1]} : vector<64x8xf32> to vector<16x8xf32>
    %61 = vector.extract_strided_slice %59 {offsets = [16, 0], sizes = [16, 8], strides = [1, 1]} : vector<64x8xf32> to vector<16x8xf32>
    %62 = vector.extract_strided_slice %59 {offsets = [32, 0], sizes = [16, 8], strides = [1, 1]} : vector<64x8xf32> to vector<16x8xf32>
    %63 = vector.extract_strided_slice %59 {offsets = [48, 0], sizes = [16, 8], strides = [1, 1]} : vector<64x8xf32> to vector<16x8xf32>
    %64 = tpu.concatenate %60, %61, %62, %63 in 1 : vector<16x8xf32>, vector<16x8xf32>, vector<16x8xf32>, vector<16x8xf32> -> vector<16x32xf32>
    %c0_23 = arith.constant 0 : index
    %c0_24 = arith.constant 0 : index
    %65 = vector.load %arg7[%c0_23, %c0_24] : memref<32x32xf32, #tpu.memory_space<vmem>>, vector<32x32xf32>
    %cst_25 = arith.constant dense<0.000000e+00> : vector<16x32xf32>
    %66 = tpu.matmul %64, %65, %cst_25 {dimension_numbers = #tpu.dot_dimension_numbers<[1], [0], [0], [1], [0, 0, 1, 1], [], []>} : vector<16x32xf32>, vector<32x32xf32>, vector<16x32xf32> -> vector<16x32xf32>
    %67 = arith.addf %4, %66 : vector<16x32xf32>
    %c0_26 = arith.constant 0 : index
    %c0_27 = arith.constant 0 : index
    %68 = vector.load %arg8[%c0_26, %c0_27] : memref<1x32xf32, #tpu.memory_space<vmem>>, vector<1x32xf32>
    %69 = vector.broadcast %68 : vector<1x32xf32> to vector<16x32xf32>
    %70 = arith.addf %67, %69 : vector<16x32xf32>
    %c0_28 = arith.constant 0 : index
    %c0_29 = arith.constant 0 : index
    %71 = vector.load %arg9[%c0_28, %c0_29] : memref<1x32xf32, #tpu.memory_space<vmem>>, vector<1x32xf32>
    %c0_30 = arith.constant 0 : index
    %c0_31 = arith.constant 0 : index
    %72 = vector.load %arg10[%c0_30, %c0_31] : memref<1x32xf32, #tpu.memory_space<vmem>>, vector<1x32xf32>
    %cst_32 = arith.constant dense<0.000000e+00> : vector<16xf32>
    %73 = vector.multi_reduction <add>, %70, %cst_32 [1] : vector<16x32xf32> to vector<16xf32>
    %74 = vector.shape_cast %73 : vector<16xf32> to vector<16x1xf32>
    %cst_33 = arith.constant 3.200000e+01 : f32
    %75 = vector.broadcast %cst_33 : f32 to vector<16x1xf32>
    %76 = arith.divf %74, %75 : vector<16x1xf32>
    %77 = vector.broadcast %76 : vector<16x1xf32> to vector<16x32xf32>
    %78 = arith.subf %70, %77 : vector<16x32xf32>
    %79 = arith.mulf %78, %78 : vector<16x32xf32>
    %cst_34 = arith.constant dense<0.000000e+00> : vector<16xf32>
    %80 = vector.multi_reduction <add>, %79, %cst_34 [1] : vector<16x32xf32> to vector<16xf32>
    %81 = vector.shape_cast %80 : vector<16xf32> to vector<16x1xf32>
    %cst_35 = arith.constant 3.200000e+01 : f32
    %82 = vector.broadcast %cst_35 : f32 to vector<16x1xf32>
    %83 = arith.divf %81, %82 : vector<16x1xf32>
    %84 = vector.broadcast %76 : vector<16x1xf32> to vector<16x32xf32>
    %85 = arith.subf %70, %84 : vector<16x32xf32>
    %cst_36 = arith.constant 9.99999974E-6 : f32
    %86 = vector.broadcast %cst_36 : f32 to vector<16x1xf32>
    %87 = arith.addf %83, %86 : vector<16x1xf32>
    %88 = math.rsqrt %87 : vector<16x1xf32>
    %89 = vector.broadcast %88 : vector<16x1xf32> to vector<16x32xf32>
    %90 = arith.mulf %85, %89 : vector<16x32xf32>
    %91 = vector.broadcast %71 : vector<1x32xf32> to vector<16x32xf32>
    %92 = arith.mulf %90, %91 : vector<16x32xf32>
    %93 = vector.broadcast %72 : vector<1x32xf32> to vector<16x32xf32>
    %94 = arith.addf %92, %93 : vector<16x32xf32>
    %c0_37 = arith.constant 0 : index
    %c0_38 = arith.constant 0 : index
    %95 = vector.load %arg11[%c0_37, %c0_38] : memref<32x128xf32, #tpu.memory_space<vmem>>, vector<32x128xf32>
    %cst_39 = arith.constant dense<0.000000e+00> : vector<16x128xf32>
    %96 = tpu.matmul %94, %95, %cst_39 {dimension_numbers = #tpu.dot_dimension_numbers<[1], [0], [0], [1], [0, 0, 1, 1], [], []>} : vector<16x32xf32>, vector<32x128xf32>, vector<16x128xf32> -> vector<16x128xf32>
    %c0_40 = arith.constant 0 : index
    %c0_41 = arith.constant 0 : index
    %97 = vector.load %arg12[%c0_40, %c0_41] : memref<1x128xf32, #tpu.memory_space<vmem>>, vector<1x128xf32>
    %98 = vector.broadcast %97 : vector<1x128xf32> to vector<16x128xf32>
    %99 = arith.addf %96, %98 : vector<16x128xf32>
    %cst_42 = arith.constant 5.000000e-01 : f32
    %100 = vector.broadcast %cst_42 : f32 to vector<16x128xf32>
    %101 = arith.mulf %100, %99 : vector<16x128xf32>
    %cst_43 = arith.constant 4.471500e-02 : f32
    %102 = vector.broadcast %cst_43 : f32 to vector<16x128xf32>
    %103 = arith.mulf %102, %99 : vector<16x128xf32>
    %104 = arith.mulf %103, %99 : vector<16x128xf32>
    %105 = arith.mulf %104, %99 : vector<16x128xf32>
    %106 = arith.addf %99, %105 : vector<16x128xf32>
    %cst_44 = arith.constant 0.797884583 : f32
    %107 = vector.broadcast %cst_44 : f32 to vector<16x128xf32>
    %108 = arith.mulf %107, %106 : vector<16x128xf32>
    %109 = math.tanh %108 : vector<16x128xf32>
    %cst_45 = arith.constant 1.000000e+00 : f32
    %110 = vector.broadcast %cst_45 : f32 to vector<16x128xf32>
    %111 = arith.addf %110, %109 : vector<16x128xf32>
    %112 = arith.mulf %101, %111 : vector<16x128xf32>
    %c0_46 = arith.constant 0 : index
    %c0_47 = arith.constant 0 : index
    %113 = vector.load %arg13[%c0_46, %c0_47] : memref<128x32xf32, #tpu.memory_space<vmem>>, vector<128x32xf32>
    %cst_48 = arith.constant dense<0.000000e+00> : vector<16x32xf32>
    %114 = tpu.matmul %112, %113, %cst_48 {dimension_numbers = #tpu.dot_dimension_numbers<[1], [0], [0], [1], [0, 0, 1, 1], [], []>} : vector<16x128xf32>, vector<128x32xf32>, vector<16x32xf32> -> vector<16x32xf32>
    %115 = arith.addf %70, %114 : vector<16x32xf32>
    %c0_49 = arith.constant 0 : index
    %c0_50 = arith.constant 0 : index
    %116 = vector.load %arg14[%c0_49, %c0_50] : memref<1x32xf32, #tpu.memory_space<vmem>>, vector<1x32xf32>
    %117 = vector.broadcast %116 : vector<1x32xf32> to vector<16x32xf32>
    %118 = arith.addf %115, %117 : vector<16x32xf32>
    %c0_51 = arith.constant 0 : index
    %c0_52 = arith.constant 0 : index
    %119 = vector.load %arg15[%c0_51, %c0_52] : memref<1x32xf32, #tpu.memory_space<vmem>>, vector<1x32xf32>
    %c0_53 = arith.constant 0 : index
    %c0_54 = arith.constant 0 : index
    %120 = vector.load %arg16[%c0_53, %c0_54] : memref<1x32xf32, #tpu.memory_space<vmem>>, vector<1x32xf32>
    %cst_55 = arith.constant dense<0.000000e+00> : vector<16xf32>
    %121 = vector.multi_reduction <add>, %118, %cst_55 [1] : vector<16x32xf32> to vector<16xf32>
    %122 = vector.shape_cast %121 : vector<16xf32> to vector<16x1xf32>
    %cst_56 = arith.constant 3.200000e+01 : f32
    %123 = vector.broadcast %cst_56 : f32 to vector<16x1xf32>
    %124 = arith.divf %122, %123 : vector<16x1xf32>
    %125 = vector.broadcast %124 : vector<16x1xf32> to vector<16x32xf32>
    %126 = arith.subf %118, %125 : vector<16x32xf32>
    %127 = arith.mulf %126, %126 : vector<16x32xf32>
    %cst_57 = arith.constant dense<0.000000e+00> : vector<16xf32>
    %128 = vector.multi_reduction <add>, %127, %cst_57 [1] : vector<16x32xf32> to vector<16xf32>
    %129 = vector.shape_cast %128 : vector<16xf32> to vector<16x1xf32>
    %cst_58 = arith.constant 3.200000e+01 : f32
    %130 = vector.broadcast %cst_58 : f32 to vector<16x1xf32>
    %131 = arith.divf %129, %130 : vector<16x1xf32>
    %132 = vector.broadcast %124 : vector<16x1xf32> to vector<16x32xf32>
    %133 = arith.subf %118, %132 : vector<16x32xf32>
    %cst_59 = arith.constant 9.99999974E-6 : f32
    %134 = vector.broadcast %cst_59 : f32 to vector<16x1xf32>
    %135 = arith.addf %131, %134 : vector<16x1xf32>
    %136 = math.rsqrt %135 : vector<16x1xf32>
    %137 = vector.broadcast %136 : vector<16x1xf32> to vector<16x32xf32>
    %138 = arith.mulf %133, %137 : vector<16x32xf32>
    %139 = vector.broadcast %119 : vector<1x32xf32> to vector<16x32xf32>
    %140 = arith.mulf %138, %139 : vector<16x32xf32>
    %141 = vector.broadcast %120 : vector<1x32xf32> to vector<16x32xf32>
    %142 = arith.addf %140, %141 : vector<16x32xf32>
    %c0_60 = arith.constant 0 : index
    %c0_61 = arith.constant 0 : index
    %143 = vector.load %arg17[%c0_60, %c0_61] : memref<32x96xf32, #tpu.memory_space<vmem>>, vector<32x96xf32>
    %cst_62 = arith.constant dense<0.000000e+00> : vector<16x96xf32>
    %144 = tpu.matmul %142, %143, %cst_62 {dimension_numbers = #tpu.dot_dimension_numbers<[1], [0], [0], [1], [0, 0, 1, 1], [], []>} : vector<16x32xf32>, vector<32x96xf32>, vector<16x96xf32> -> vector<16x96xf32>
    %145 = vector.extract_strided_slice %144 {offsets = [0, 0], sizes = [16, 8], strides = [1, 1]} : vector<16x96xf32> to vector<16x8xf32>
    %146 = vector.extract_strided_slice %144 {offsets = [0, 8], sizes = [16, 8], strides = [1, 1]} : vector<16x96xf32> to vector<16x8xf32>
    %147 = vector.extract_strided_slice %144 {offsets = [0, 16], sizes = [16, 8], strides = [1, 1]} : vector<16x96xf32> to vector<16x8xf32>
    %148 = vector.extract_strided_slice %144 {offsets = [0, 24], sizes = [16, 8], strides = [1, 1]} : vector<16x96xf32> to vector<16x8xf32>
    %149 = tpu.concatenate %145, %146, %147, %148 in 0 : vector<16x8xf32>, vector<16x8xf32>, vector<16x8xf32>, vector<16x8xf32> -> vector<64x8xf32>
    %150 = vector.extract_strided_slice %144 {offsets = [0, 32], sizes = [16, 8], strides = [1, 1]} : vector<16x96xf32> to vector<16x8xf32>
    %151 = vector.extract_strided_slice %144 {offsets = [0, 40], sizes = [16, 8], strides = [1, 1]} : vector<16x96xf32> to vector<16x8xf32>
    %152 = vector.extract_strided_slice %144 {offsets = [0, 48], sizes = [16, 8], strides = [1, 1]} : vector<16x96xf32> to vector<16x8xf32>
    %153 = vector.extract_strided_slice %144 {offsets = [0, 56], sizes = [16, 8], strides = [1, 1]} : vector<16x96xf32> to vector<16x8xf32>
    %154 = tpu.concatenate %150, %151, %152, %153 in 0 : vector<16x8xf32>, vector<16x8xf32>, vector<16x8xf32>, vector<16x8xf32> -> vector<64x8xf32>
    %155 = vector.extract_strided_slice %144 {offsets = [0, 64], sizes = [16, 8], strides = [1, 1]} : vector<16x96xf32> to vector<16x8xf32>
    %156 = vector.extract_strided_slice %144 {offsets = [0, 72], sizes = [16, 8], strides = [1, 1]} : vector<16x96xf32> to vector<16x8xf32>
    %157 = vector.extract_strided_slice %144 {offsets = [0, 80], sizes = [16, 8], strides = [1, 1]} : vector<16x96xf32> to vector<16x8xf32>
    %158 = vector.extract_strided_slice %144 {offsets = [0, 88], sizes = [16, 8], strides = [1, 1]} : vector<16x96xf32> to vector<16x8xf32>
    %159 = tpu.concatenate %155, %156, %157, %158 in 0 : vector<16x8xf32>, vector<16x8xf32>, vector<16x8xf32>, vector<16x8xf32> -> vector<64x8xf32>
    %cst_63 = arith.constant dense<0.000000e+00> : vector<64x64xf32>
    %160 = tpu.matmul %149, %154, %cst_63 {dimension_numbers = #tpu.dot_dimension_numbers<[1], [1], [0], [0], [0, 0, 1, 0], [], []>} : vector<64x8xf32>, vector<64x8xf32>, vector<64x64xf32> -> vector<64x64xf32>
    %c0_64 = arith.constant 0 : index
    %c0_65 = arith.constant 0 : index
    %161 = vector.load %arg2[%c0_64, %c0_65] : memref<64x64xf32, #tpu.memory_space<vmem>>, vector<64x64xf32>
    %162 = arith.addf %160, %161 : vector<64x64xf32>
    %cst_66 = arith.constant dense<0xFF800000> : vector<64xf32>
    %163 = vector.multi_reduction <maximumf>, %162, %cst_66 [1] : vector<64x64xf32> to vector<64xf32>
    %164 = vector.shape_cast %163 : vector<64xf32> to vector<64x1xf32>
    %165 = vector.broadcast %164 : vector<64x1xf32> to vector<64x64xf32>
    %166 = arith.subf %162, %165 : vector<64x64xf32>
    %167 = math.exp %166 : vector<64x64xf32>
    %cst_67 = arith.constant dense<0.000000e+00> : vector<64xf32>
    %168 = vector.multi_reduction <add>, %167, %cst_67 [1] : vector<64x64xf32> to vector<64xf32>
    %169 = vector.shape_cast %168 : vector<64xf32> to vector<64x1xf32>
    %170 = tpu.reciprocal %169 {approx = true} : vector<64x1xf32> -> vector<64x1xf32>
    %171 = vector.broadcast %170 : vector<64x1xf32> to vector<64x64xf32>
    %172 = arith.mulf %167, %171 : vector<64x64xf32>
    %cst_68 = arith.constant dense<0.000000e+00> : vector<64x8xf32>
    %173 = tpu.matmul %172, %159, %cst_68 {dimension_numbers = #tpu.dot_dimension_numbers<[1], [0], [0], [1], [0, 0, 1, 1], [], []>} : vector<64x64xf32>, vector<64x8xf32>, vector<64x8xf32> -> vector<64x8xf32>
    %174 = vector.extract_strided_slice %173 {offsets = [0, 0], sizes = [16, 8], strides = [1, 1]} : vector<64x8xf32> to vector<16x8xf32>
    %175 = vector.extract_strided_slice %173 {offsets = [16, 0], sizes = [16, 8], strides = [1, 1]} : vector<64x8xf32> to vector<16x8xf32>
    %176 = vector.extract_strided_slice %173 {offsets = [32, 0], sizes = [16, 8], strides = [1, 1]} : vector<64x8xf32> to vector<16x8xf32>
    %177 = vector.extract_strided_slice %173 {offsets = [48, 0], sizes = [16, 8], strides = [1, 1]} : vector<64x8xf32> to vector<16x8xf32>
    %178 = tpu.concatenate %174, %175, %176, %177 in 1 : vector<16x8xf32>, vector<16x8xf32>, vector<16x8xf32>, vector<16x8xf32> -> vector<16x32xf32>
    %c0_69 = arith.constant 0 : index
    %c0_70 = arith.constant 0 : index
    %179 = vector.load %arg18[%c0_69, %c0_70] : memref<32x32xf32, #tpu.memory_space<vmem>>, vector<32x32xf32>
    %cst_71 = arith.constant dense<0.000000e+00> : vector<16x32xf32>
    %180 = tpu.matmul %178, %179, %cst_71 {dimension_numbers = #tpu.dot_dimension_numbers<[1], [0], [0], [1], [0, 0, 1, 1], [], []>} : vector<16x32xf32>, vector<32x32xf32>, vector<16x32xf32> -> vector<16x32xf32>
    %181 = arith.addf %118, %180 : vector<16x32xf32>
    %c0_72 = arith.constant 0 : index
    %c0_73 = arith.constant 0 : index
    %182 = vector.load %arg19[%c0_72, %c0_73] : memref<1x32xf32, #tpu.memory_space<vmem>>, vector<1x32xf32>
    %183 = vector.broadcast %182 : vector<1x32xf32> to vector<16x32xf32>
    %184 = arith.addf %181, %183 : vector<16x32xf32>
    %c0_74 = arith.constant 0 : index
    %c0_75 = arith.constant 0 : index
    %185 = vector.load %arg20[%c0_74, %c0_75] : memref<1x32xf32, #tpu.memory_space<vmem>>, vector<1x32xf32>
    %c0_76 = arith.constant 0 : index
    %c0_77 = arith.constant 0 : index
    %186 = vector.load %arg21[%c0_76, %c0_77] : memref<1x32xf32, #tpu.memory_space<vmem>>, vector<1x32xf32>
    %cst_78 = arith.constant dense<0.000000e+00> : vector<16xf32>
    %187 = vector.multi_reduction <add>, %184, %cst_78 [1] : vector<16x32xf32> to vector<16xf32>
    %188 = vector.shape_cast %187 : vector<16xf32> to vector<16x1xf32>
    %cst_79 = arith.constant 3.200000e+01 : f32
    %189 = vector.broadcast %cst_79 : f32 to vector<16x1xf32>
    %190 = arith.divf %188, %189 : vector<16x1xf32>
    %191 = vector.broadcast %190 : vector<16x1xf32> to vector<16x32xf32>
    %192 = arith.subf %184, %191 : vector<16x32xf32>
    %193 = arith.mulf %192, %192 : vector<16x32xf32>
    %cst_80 = arith.constant dense<0.000000e+00> : vector<16xf32>
    %194 = vector.multi_reduction <add>, %193, %cst_80 [1] : vector<16x32xf32> to vector<16xf32>
    %195 = vector.shape_cast %194 : vector<16xf32> to vector<16x1xf32>
    %cst_81 = arith.constant 3.200000e+01 : f32
    %196 = vector.broadcast %cst_81 : f32 to vector<16x1xf32>
    %197 = arith.divf %195, %196 : vector<16x1xf32>
    %198 = vector.broadcast %190 : vector<16x1xf32> to vector<16x32xf32>
    %199 = arith.subf %184, %198 : vector<16x32xf32>
    %cst_82 = arith.constant 9.99999974E-6 : f32
    %200 = vector.broadcast %cst_82 : f32 to vector<16x1xf32>
    %201 = arith.addf %197, %200 : vector<16x1xf32>
    %202 = math.rsqrt %201 : vector<16x1xf32>
    %203 = vector.broadcast %202 : vector<16x1xf32> to vector<16x32xf32>
    %204 = arith.mulf %199, %203 : vector<16x32xf32>
    %205 = vector.broadcast %185 : vector<1x32xf32> to vector<16x32xf32>
    %206 = arith.mulf %204, %205 : vector<16x32xf32>
    %207 = vector.broadcast %186 : vector<1x32xf32> to vector<16x32xf32>
    %208 = arith.addf %206, %207 : vector<16x32xf32>
    %c0_83 = arith.constant 0 : index
    %c0_84 = arith.constant 0 : index
    %209 = vector.load %arg22[%c0_83, %c0_84] : memref<32x128xf32, #tpu.memory_space<vmem>>, vector<32x128xf32>
    %cst_85 = arith.constant dense<0.000000e+00> : vector<16x128xf32>
    %210 = tpu.matmul %208, %209, %cst_85 {dimension_numbers = #tpu.dot_dimension_numbers<[1], [0], [0], [1], [0, 0, 1, 1], [], []>} : vector<16x32xf32>, vector<32x128xf32>, vector<16x128xf32> -> vector<16x128xf32>
    %c0_86 = arith.constant 0 : index
    %c0_87 = arith.constant 0 : index
    %211 = vector.load %arg23[%c0_86, %c0_87] : memref<1x128xf32, #tpu.memory_space<vmem>>, vector<1x128xf32>
    %212 = vector.broadcast %211 : vector<1x128xf32> to vector<16x128xf32>
    %213 = arith.addf %210, %212 : vector<16x128xf32>
    %cst_88 = arith.constant 5.000000e-01 : f32
    %214 = vector.broadcast %cst_88 : f32 to vector<16x128xf32>
    %215 = arith.mulf %214, %213 : vector<16x128xf32>
    %cst_89 = arith.constant 4.471500e-02 : f32
    %216 = vector.broadcast %cst_89 : f32 to vector<16x128xf32>
    %217 = arith.mulf %216, %213 : vector<16x128xf32>
    %218 = arith.mulf %217, %213 : vector<16x128xf32>
    %219 = arith.mulf %218, %213 : vector<16x128xf32>
    %220 = arith.addf %213, %219 : vector<16x128xf32>
    %cst_90 = arith.constant 0.797884583 : f32
    %221 = vector.broadcast %cst_90 : f32 to vector<16x128xf32>
    %222 = arith.mulf %221, %220 : vector<16x128xf32>
    %223 = math.tanh %222 : vector<16x128xf32>
    %cst_91 = arith.constant 1.000000e+00 : f32
    %224 = vector.broadcast %cst_91 : f32 to vector<16x128xf32>
    %225 = arith.addf %224, %223 : vector<16x128xf32>
    %226 = arith.mulf %215, %225 : vector<16x128xf32>
    %c0_92 = arith.constant 0 : index
    %c0_93 = arith.constant 0 : index
    %227 = vector.load %arg24[%c0_92, %c0_93] : memref<128x32xf32, #tpu.memory_space<vmem>>, vector<128x32xf32>
    %cst_94 = arith.constant dense<0.000000e+00> : vector<16x32xf32>
    %228 = tpu.matmul %226, %227, %cst_94 {dimension_numbers = #tpu.dot_dimension_numbers<[1], [0], [0], [1], [0, 0, 1, 1], [], []>} : vector<16x128xf32>, vector<128x32xf32>, vector<16x32xf32> -> vector<16x32xf32>
    %229 = arith.addf %184, %228 : vector<16x32xf32>
    %c0_95 = arith.constant 0 : index
    %c0_96 = arith.constant 0 : index
    %230 = vector.load %arg25[%c0_95, %c0_96] : memref<1x32xf32, #tpu.memory_space<vmem>>, vector<1x32xf32>
    %231 = vector.broadcast %230 : vector<1x32xf32> to vector<16x32xf32>
    %232 = arith.addf %229, %231 : vector<16x32xf32>
    %c0_97 = arith.constant 0 : index
    %c0_98 = arith.constant 0 : index
    %233 = vector.load %arg26[%c0_97, %c0_98] : memref<1x32xf32, #tpu.memory_space<vmem>>, vector<1x32xf32>
    %c0_99 = arith.constant 0 : index
    %c0_100 = arith.constant 0 : index
    %234 = vector.load %arg27[%c0_99, %c0_100] : memref<1x32xf32, #tpu.memory_space<vmem>>, vector<1x32xf32>
    %cst_101 = arith.constant dense<0.000000e+00> : vector<16xf32>
    %235 = vector.multi_reduction <add>, %232, %cst_101 [1] : vector<16x32xf32> to vector<16xf32>
    %236 = vector.shape_cast %235 : vector<16xf32> to vector<16x1xf32>
    %cst_102 = arith.constant 3.200000e+01 : f32
    %237 = vector.broadcast %cst_102 : f32 to vector<16x1xf32>
    %238 = arith.divf %236, %237 : vector<16x1xf32>
    %239 = vector.broadcast %238 : vector<16x1xf32> to vector<16x32xf32>
    %240 = arith.subf %232, %239 : vector<16x32xf32>
    %241 = arith.mulf %240, %240 : vector<16x32xf32>
    %cst_103 = arith.constant dense<0.000000e+00> : vector<16xf32>
    %242 = vector.multi_reduction <add>, %241, %cst_103 [1] : vector<16x32xf32> to vector<16xf32>
    %243 = vector.shape_cast %242 : vector<16xf32> to vector<16x1xf32>
    %cst_104 = arith.constant 3.200000e+01 : f32
    %244 = vector.broadcast %cst_104 : f32 to vector<16x1xf32>
    %245 = arith.divf %243, %244 : vector<16x1xf32>
    %246 = vector.broadcast %238 : vector<16x1xf32> to vector<16x32xf32>
    %247 = arith.subf %232, %246 : vector<16x32xf32>
    %cst_105 = arith.constant 9.99999974E-6 : f32
    %248 = vector.broadcast %cst_105 : f32 to vector<16x1xf32>
    %249 = arith.addf %245, %248 : vector<16x1xf32>
    %250 = math.rsqrt %249 : vector<16x1xf32>
    %251 = vector.broadcast %250 : vector<16x1xf32> to vector<16x32xf32>
    %252 = arith.mulf %247, %251 : vector<16x32xf32>
    %253 = vector.broadcast %233 : vector<1x32xf32> to vector<16x32xf32>
    %254 = arith.mulf %252, %253 : vector<16x32xf32>
    %255 = vector.broadcast %234 : vector<1x32xf32> to vector<16x32xf32>
    %256 = arith.addf %254, %255 : vector<16x32xf32>
    %c0_106 = arith.constant 0 : index
    %c0_107 = arith.constant 0 : index
    %257 = vector.load %arg28[%c0_106, %c0_107] : memref<32x128xf32, #tpu.memory_space<vmem>>, vector<32x128xf32>
    %cst_108 = arith.constant dense<0.000000e+00> : vector<16x128xf32>
    %258 = tpu.matmul %256, %257, %cst_108 {dimension_numbers = #tpu.dot_dimension_numbers<[1], [0], [0], [1], [0, 0, 1, 1], [], []>} : vector<16x32xf32>, vector<32x128xf32>, vector<16x128xf32> -> vector<16x128xf32>
    %c0_109 = arith.constant 0 : index
    %c0_110 = arith.constant 0 : index
    %259 = vector.load %arg29[%c0_109, %c0_110] : memref<1x128xf32, #tpu.memory_space<vmem>>, vector<1x128xf32>
    %260 = vector.broadcast %259 : vector<1x128xf32> to vector<16x128xf32>
    %261 = arith.addf %258, %260 : vector<16x128xf32>
    %c0_111 = arith.constant 0 : index
    %c0_112 = arith.constant 0 : index
    %262 = vector.load %arg30[%c0_111, %c0_112] : memref<16x128xf32, #tpu.memory_space<vmem>>, vector<16x128xf32>
    tpu.vector_store %arg30[%c0_111, %c0_112], %261 {strides = array<i32>} : memref<16x128xf32, #tpu.memory_space<vmem>>, vector<16x128xf32>,
    return
  }
}

</mosaic_0001>

<llo_original>
// kernel: vit_forward.1
$region0: #{vit_forward.1}
  #allocation0 [shape = 'u32[]', space=smem, size = 0x4, offset = 0x4, fixed_abs, tag = 'smem constant byte address 0x4 - core index']
  #allocation1 [shape = 'u32[72,128]{1,0:T(1,128)}', space=vmem, size = 0x9000, scoped, tag = 'internal scratch']
  %s0 = inlined_call_operand.smem [shape: u32[31], index: -1, kind: input, shape index: {}]
  %s1 = sld [smem:[%s0]]
  %s2 = scalar_lea.smem %s0, 1
  %s3 = sld [smem:[%s2]]
  %s4 = scalar_lea.smem %s0, 2
  %s5 = sld [smem:[%s4]]
  %s6 = scalar_lea.smem %s0, 3
  %s7 = sld [smem:[%s6]]
  %s8 = scalar_lea.smem %s0, 4
  %s9 = sld [smem:[%s8]]
  %s10 = scalar_lea.smem %s0, 5
  %s11 = sld [smem:[%s10]]
  %s12 = scalar_lea.smem %s0, 6
  %s13 = sld [smem:[%s12]]
  %s14 = scalar_lea.smem %s0, 7
  %s15 = sld [smem:[%s14]]
  %s16 = scalar_lea.smem %s0, 8
  %s17 = sld [smem:[%s16]]
  %s18 = scalar_lea.smem %s0, 9
  %s19 = sld [smem:[%s18]]
  %s20 = scalar_lea.smem %s0, 10
  %s21 = sld [smem:[%s20]]
  %s22 = scalar_lea.smem %s0, 11
  %s23 = sld [smem:[%s22]]
  %s24 = scalar_lea.smem %s0, 12
  %s25 = sld [smem:[%s24]]
  %s26 = scalar_lea.smem %s0, 13
  %s27 = sld [smem:[%s26]]
  %s28 = scalar_lea.smem %s0, 14
  %s29 = sld [smem:[%s28]]
  %s30 = scalar_lea.smem %s0, 15
  %s31 = sld [smem:[%s30]]
  %s32 = scalar_lea.smem %s0, 16
  %s33 = sld [smem:[%s32]]
  %s34 = scalar_lea.smem %s0, 17
  %s35 = sld [smem:[%s34]]
  %s36 = scalar_lea.smem %s0, 18
  %s37 = sld [smem:[%s36]]
  %s38 = scalar_lea.smem %s0, 19
  %s39 = sld [smem:[%s38]]
  %s40 = scalar_lea.smem %s0, 20
  %s41 = sld [smem:[%s40]]
  %s42 = scalar_lea.smem %s0, 21
  %s43 = sld [smem:[%s42]]
  %s44 = scalar_lea.smem %s0, 22
  %s45 = sld [smem:[%s44]]
  %s46 = scalar_lea.smem %s0, 23
  %s47 = sld [smem:[%s46]]
  %s48 = scalar_lea.smem %s0, 24
  %s49 = sld [smem:[%s48]]
  %s50 = scalar_lea.smem %s0, 25
  %s51 = sld [smem:[%s50]]
  %s52 = scalar_lea.smem %s0, 26
  %s53 = sld [smem:[%s52]]
  %s54 = scalar_lea.smem %s0, 27
  %s55 = sld [smem:[%s54]]
  %s56 = scalar_lea.smem %s0, 28
  %s57 = sld [smem:[%s56]]
  %s58 = scalar_lea.smem %s0, 29
  %s59 = sld [smem:[%s58]]
  %s60 = scalar_lea.smem %s0, 30
  %s61 = sld [smem:[%s60]]
  %s62 = sld [smem:[#allocation0]]
  $region130: #{vit_forward.1} parent=0
    _
  %s64 = ssub.s32 1, %s62
  %s65 = scalar_select 0, %s64, %s62
  // Predicated region
  $region2: #{vit_forward.1} parent=0 // pred_check
    _
  $region3: #{vit_forward.1} parent=0 // pred_check_branch
    %67 = sbr.rel (0) target = $region5
  $region4: #{vit_forward.1} parent=0 // pred_region
    _
  $region5: #{vit_forward.1} parent=0 // pred_fallthru
    _
  // Predicated region
  $region6: #{vit_forward.1} parent=0 // pred_check
    _
  $region7: #{vit_forward.1} parent=0 // pred_check_branch
    %69 = sbr.rel (0) target = $region9
  $region8: #{vit_forward.1} parent=0 // pred_region
    _
  $region9: #{vit_forward.1} parent=0 // pred_fallthru
    _
  // Predicated region
  $region10: #{vit_forward.1} parent=0 // pred_check
    _
  $region11: #{vit_forward.1} parent=0 // pred_check_branch
    %71 = sbr.rel (0) target = $region13
  $region12: #{vit_forward.1} parent=0 // pred_region
    _
  $region13: #{vit_forward.1} parent=0 // pred_fallthru
    _
  // Predicated region
  $region14: #{vit_forward.1} parent=0 // pred_check
    _
  $region15: #{vit_forward.1} parent=0 // pred_check_branch
    %73 = sbr.rel (0) target = $region17
  $region16: #{vit_forward.1} parent=0 // pred_region
    _
  $region17: #{vit_forward.1} parent=0 // pred_fallthru
    _
  // Predicated region
  $region18: #{vit_forward.1} parent=0 // pred_check
    _
  $region19: #{vit_forward.1} parent=0 // pred_check_branch
    %75 = sbr.rel (0) target = $region21
  $region20: #{vit_forward.1} parent=0 // pred_region
    _
  $region21: #{vit_forward.1} parent=0 // pred_fallthru
    _
  // Predicated region
  $region22: #{vit_forward.1} parent=0 // pred_check
    _
  $region23: #{vit_forward.1} parent=0 // pred_check_branch
    %77 = sbr.rel (0) target = $region25
  $region24: #{vit_forward.1} parent=0 // pred_region
    _
  $region25: #{vit_forward.1} parent=0 // pred_fallthru
    _
  // Predicated region
  $region26: #{vit_forward.1} parent=0 // pred_check
    _
  $region27: #{vit_forward.1} parent=0 // pred_check_branch
    %79 = sbr.rel (0) target = $region29
  $region28: #{vit_forward.1} parent=0 // pred_region
    _
  $region29: #{vit_forward.1} parent=0 // pred_fallthru
    _
  // Predicated region
  $region30: #{vit_forward.1} parent=0 // pred_check
    _
  $region31: #{vit_forward.1} parent=0 // pred_check_branch
    %81 = sbr.rel (0) target = $region33
  $region32: #{vit_forward.1} parent=0 // pred_region
    _
  $region33: #{vit_forward.1} parent=0 // pred_fallthru
    _
  // Predicated region
  $region34: #{vit_forward.1} parent=0 // pred_check
    _
  $region35: #{vit_forward.1} parent=0 // pred_check_branch
    %83 = sbr.rel (0) target = $region37
  $region36: #{vit_forward.1} parent=0 // pred_region
    _
  $region37: #{vit_forward.1} parent=0 // pred_fallthru
    _
  // Predicated region
  $region38: #{vit_forward.1} parent=0 // pred_check
    _
  $region39: #{vit_forward.1} parent=0 // pred_check_branch
    %85 = sbr.rel (0) target = $region41
  $region40: #{vit_forward.1} parent=0 // pred_region
    _
  $region41: #{vit_forward.1} parent=0 // pred_fallthru
    _
  // Predicated region
  $region42: #{vit_forward.1} parent=0 // pred_check
    _
  $region43: #{vit_forward.1} parent=0 // pred_check_branch
    %87 = sbr.rel (0) target = $region45
  $region44: #{vit_forward.1} parent=0 // pred_region
    _
  $region45: #{vit_forward.1} parent=0 // pred_fallthru
    _
  // Predicated region
  $region46: #{vit_forward.1} parent=0 // pred_check
    _
  $region47: #{vit_forward.1} parent=0 // pred_check_branch
    %89 = sbr.rel (0) target = $region49
  $region48: #{vit_forward.1} parent=0 // pred_region
    _
  $region49: #{vit_forward.1} parent=0 // pred_fallthru
    _
  // Predicated region
  $region50: #{vit_forward.1} parent=0 // pred_check
    _
  $region51: #{vit_forward.1} parent=0 // pred_check_branch
    %91 = sbr.rel (0) target = $region53
  $region52: #{vit_forward.1} parent=0 // pred_region
    _
  $region53: #{vit_forward.1} parent=0 // pred_fallthru
    _
  // Predicated region
  $region54: #{vit_forward.1} parent=0 // pred_check
    _
  $region55: #{vit_forward.1} parent=0 // pred_check_branch
    %93 = sbr.rel (0) target = $region57
  $region56: #{vit_forward.1} parent=0 // pred_region
    _
  $region57: #{vit_forward.1} parent=0 // pred_fallthru
    _
  // Predicated region
  $region58: #{vit_forward.1} parent=0 // pred_check
    _
  $region59: #{vit_forward.1} parent=0 // pred_check_branch
    %95 = sbr.rel (0) target = $region61
  $region60: #{vit_forward.1} parent=0 // pred_region
    _
  $region61: #{vit_forward.1} parent=0 // pred_fallthru
    _
  // Predicated region
  $region62: #{vit_forward.1} parent=0 // pred_check
    _
  $region63: #{vit_forward.1} parent=0 // pred_check_branch
    %97 = sbr.rel (0) target = $region65
  $region64: #{vit_forward.1} parent=0 // pred_region
    _
  $region65: #{vit_forward.1} parent=0 // pred_fallthru
    _
  // Predicated region
  $region66: #{vit_forward.1} parent=0 // pred_check
    _
  $region67: #{vit_forward.1} parent=0 // pred_check_branch
    %99 = sbr.rel (0) target = $region69
  $region68: #{vit_forward.1} parent=0 // pred_region
    _
  $region69: #{vit_forward.1} parent=0 // pred_fallthru
    _
  // Predicated region
  $region70: #{vit_forward.1} parent=0 // pred_check
    _
  $region71: #{vit_forward.1} parent=0 // pred_check_branch
    %101 = sbr.rel (0) target = $region73
  $region72: #{vit_forward.1} parent=0 // pred_region
    _
  $region73: #{vit_forward.1} parent=0 // pred_fallthru
    _
  // Predicated region
  $region74: #{vit_forward.1} parent=0 // pred_check
    _
  $region75: #{vit_forward.1} parent=0 // pred_check_branch
    %103 = sbr.rel (0) target = $region77
  $region76: #{vit_forward.1} parent=0 // pred_region
    _
  $region77: #{vit_forward.1} parent=0 // pred_fallthru
    _
  // Predicated region
  $region78: #{vit_forward.1} parent=0 // pred_check
    _
  $region79: #{vit_forward.1} parent=0 // pred_check_branch
    %105 = sbr.rel (0) target = $region81
  $region80: #{vit_forward.1} parent=0 // pred_region
    _
  $region81: #{vit_forward.1} parent=0 // pred_fallthru
    _
  // Predicated region
  $region82: #{vit_forward.1} parent=0 // pred_check
    _
  $region83: #{vit_forward.1} parent=0 // pred_check_branch
    %107 = sbr.rel (0) target = $region85
  $region84: #{vit_forward.1} parent=0 // pred_region
    _
  $region85: #{vit_forward.1} parent=0 // pred_fallthru
    _
  // Predicated region
  $region86: #{vit_forward.1} parent=0 // pred_check
    _
  $region87: #{vit_forward.1} parent=0 // pred_check_branch
    %109 = sbr.rel (0) target = $region89
  $region88: #{vit_forward.1} parent=0 // pred_region
    _
  $region89: #{vit_forward.1} parent=0 // pred_fallthru
    _
  // Predicated region
  $region90: #{vit_forward.1} parent=0 // pred_check
    _
  $region91: #{vit_forward.1} parent=0 // pred_check_branch
    %111 = sbr.rel (0) target = $region93
  $region92: #{vit_forward.1} parent=0 // pred_region
    _
  $region93: #{vit_forward.1} parent=0 // pred_fallthru
    _
  // Predicated region
  $region94: #{vit_forward.1} parent=0 // pred_check
    _
  $region95: #{vit_forward.1} parent=0 // pred_check_branch
    %113 = sbr.rel (0) target = $region97
  $region96: #{vit_forward.1} parent=0 // pred_region
    _
  $region97: #{vit_forward.1} parent=0 // pred_fallthru
    _
  // Predicated region
  $region98: #{vit_forward.1} parent=0 // pred_check
    _
  $region99: #{vit_forward.1} parent=0 // pred_check_branch
    %115 = sbr.rel (0) target = $region101
  $region100: #{vit_forward.1} parent=0 // pred_region
    _
  $region101: #{vit_forward.1} parent=0 // pred_fallthru
    _
  // Predicated region
  $region102: #{vit_forward.1} parent=0 // pred_check
    _
  $region103: #{vit_forward.1} parent=0 // pred_check_branch
    %117 = sbr.rel (0) target = $region105
  $region104: #{vit_forward.1} parent=0 // pred_region
    _
  $region105: #{vit_forward.1} parent=0 // pred_fallthru
    _
  // Predicated region
  $region106: #{vit_forward.1} parent=0 // pred_check
    _
  $region107: #{vit_forward.1} parent=0 // pred_check_branch
    %119 = sbr.rel (0) target = $region109
  $region108: #{vit_forward.1} parent=0 // pred_region
    _
  $region109: #{vit_forward.1} parent=0 // pred_fallthru
    _
  // Predicated region
  $region110: #{vit_forward.1} parent=0 // pred_check
    _
  $region111: #{vit_forward.1} parent=0 // pred_check_branch
    %121 = sbr.rel (0) target = $region113
  $region112: #{vit_forward.1} parent=0 // pred_region
    _
  $region113: #{vit_forward.1} parent=0 // pred_fallthru
    _
  // Predicated region
  $region114: #{vit_forward.1} parent=0 // pred_check
    _
  $region115: #{vit_forward.1} parent=0 // pred_check_branch
    %123 = sbr.rel (0) target = $region117
  $region116: #{vit_forward.1} parent=0 // pred_region
    _
  $region117: #{vit_forward.1} parent=0 // pred_fallthru
    _
  // Predicated region
  $region118: #{vit_forward.1} parent=0 // pred_check
    _
  $region119: #{vit_forward.1} parent=0 // pred_check_branch
    %125 = sbr.rel (0) target = $region121
  $region120: #{vit_forward.1} parent=0 // pred_region
    _
  $region121: #{vit_forward.1} parent=0 // pred_fallthru
    _
  %v126 = vld [vmem:[%s1] sm:$0xff]
  %v127 = vld [vmem:[%s1 + $0x8] sm:$0xff]
  %v128 = vld [vmem:[%s1 + $0x10] sm:$0xff]
  %v129 = vld [vmem:[%s1 + $0x18] sm:$0xff]
  %v130 = vld [vmem:[%s7] sm:$0xff]
  %v131 = vld [vmem:[%s7 + $0x8] sm:$0xff]
  %v132 = vld [vmem:[%s7 + $0x10] sm:$0xff]
  %v133 = vld [vmem:[%s7 + $0x18] sm:$0xff]
  %v134 = vld [vmem:[%s7 + $0x20] sm:$0xff]
  %v135 = vld [vmem:[%s7 + $0x28] sm:$0xff]
  %v136 = vld [vmem:[%s7 + $0x30] sm:$0xff]
  %v137 = vld [vmem:[%s7 + $0x38] sm:$0xff]
  %v138 = vld [vmem:[%s7 + $0x40] sm:$0xff]
  %v139 = vld [vmem:[%s7 + $0x48] sm:$0xff]
  %v140 = vld [vmem:[%s7 + $0x50] sm:$0xff]
  %v141 = vld [vmem:[%s7 + $0x58] sm:$0xff]
  %v142 = vld [vmem:[%s7 + $0x60] sm:$0xff]
  %v143 = vld [vmem:[%s7 + $0x68] sm:$0xff]
  %v144 = vld [vmem:[%s7 + $0x70] sm:$0xff]
  %v145 = vld [vmem:[%s7 + $0x78] sm:$0xff]
  %v146 = vld [vmem:[%s7 + $0x80] sm:$0xff]
  %v147 = vld [vmem:[%s7 + $0x88] sm:$0xff]
  %v148 = vld [vmem:[%s7 + $0x90] sm:$0xff]
  %v149 = vld [vmem:[%s7 + $0x98] sm:$0xff]
  %v150 = vld [vmem:[%s7 + $0xa0] sm:$0xff]
  %v151 = vld [vmem:[%s7 + $0xa8] sm:$0xff]
  %v152 = vld [vmem:[%s7 + $0xb0] sm:$0xff]
  %v153 = vld [vmem:[%s7 + $0xb8] sm:$0xff]
  %v154 = vld [vmem:[%s3] sm:$0xff]
  %v155 = vld [vmem:[%s3 + $0x8] sm:$0xff]
  %vm156 = vcmask 523264
  %v158 = vsel %vm156, %v127, 0
  %v161 = vsel %vm156, %v129, 0
  %163 = vmatpush.msra.mxu0 %v145
  %164 = vmatpush.msra.mxu0 %v144
  %165 = vmatpush.msra.mxu0 %v143
  %166 = vmatpush.msra.mxu0 %v142
  %167 = vmatpush.msra.mxu0 %v141
  %168 = vmatpush.msra.mxu0 %v140
  %169 = vmatpush.msra.mxu0 %v139
  %170 = vmatpush.msra.mxu0 %v138
  %171 = vmatpush.msra.mxu0 %v137
  %172 = vmatpush.msra.mxu0 %v136
  %173 = vmatpush.msra.mxu0 %v135
  %174 = vmatpush.msra.mxu0 %v134
  %175 = vmatpush.msra.mxu0 %v133
  %176 = vmatpush.msra.mxu0 %v132
  %177 = vmatpush.msra.mxu0 %v131
  %178 = vmatpush.msra.mxu0 %v130
  %179 = vmatmul.f32.gmra.mxu0 %v126
  %v180 = vpop.f32.mrf.mxu0
  %v181 = vadd.f32 %v154, %v180
  %182 = vmatmul.f32.gmra.mxu0 %v128
  %v183 = vpop.f32.mrf.mxu0
  %v184 = vadd.f32 %v155, %v183
  %185 = vdwg.mxu0
  %186 = vmatpush.msra.mxu0 0.0
  %187 = vmatpush.msra.mxu0 0.0
  %188 = vmatpush.msra.mxu0 0.0
  %189 = vmatpush.msra.mxu0 0.0
  %190 = vmatpush.msra.mxu0 0.0
  %191 = vmatpush.msra.mxu0 0.0
  %192 = vmatpush.msra.mxu0 0.0
  %193 = vmatpush.msra.mxu0 0.0
  %194 = vmatpush.msra.mxu0 %v153
  %195 = vmatpush.msra.mxu0 %v152
  %196 = vmatpush.msra.mxu0 %v151
  %197 = vmatpush.msra.mxu0 %v150
  %198 = vmatpush.msra.mxu0 %v149
  %199 = vmatpush.msra.mxu0 %v148
  %200 = vmatpush.msra.mxu0 %v147
  %201 = vmatpush.msra.mxu0 %v146
  %202 = vmatmul.f32.gmra.mxu0 %v158
  %v203 = vpop.f32.mrf.mxu0
  %v204 = vadd.f32 %v181, %v203
  %205 = vmatmul.f32.gmra.mxu0 %v161
  %v206 = vpop.f32.mrf.mxu0
  %v207 = vadd.f32 %v184, %v206
  %208 = vdwg.mxu0
  %v209 = vld [vmem:[%s9] sm:$0x1]
  %v210 = vld [vmem:[%s11] sm:$0x1]
  %vm211 = vcmask 261120
  %v212 = vsel %vm211, %v204, 0.0
  %213 = vadd.xlane.f32.xlu0 %v212
  %v214 = vpop.xlane.xlu0 %213
  %v215 = vsel %vm211, %v207, 0.0
  %216 = vadd.xlane.f32.xlu0 %v215
  %v217 = vpop.xlane.xlu0 %216
  %v218 = vrcp.pop 32.0
  %v219 = vmul.f32 32.0, %v218
  %v220 = vsub.f32 1.0, %v219
  %v221 = vmul.f32 %v218, %v220
  %v222 = vadd.f32 %v218, %v221
  %vm223 = vweird.f32 %v218
  %v224 = vsel %vm223, %v218, %v222
  %v225 = vmul.f32 %v214, %v224
  %v226 = vmul.f32 %v217, %v224
  %v227 = vsub.f32 %v204, %v225
  %v228 = vsub.f32 %v207, %v226
  %v229 = vmul.f32 %v227, %v227
  %v230 = vmul.f32 %v228, %v228
  %v231 = vsel %vm211, %v229, 0.0
  %232 = vadd.xlane.f32.xlu0 %v231
  %v233 = vpop.xlane.xlu0 %232
  %v234 = vsel %vm211, %v230, 0.0
  %235 = vadd.xlane.f32.xlu0 %v234
  %v236 = vpop.xlane.xlu0 %235
  %v237 = vmul.f32 %v233, %v224
  %v238 = vmul.f32 %v236, %v224
  %v239 = vadd.f32 %v237, 1e-05
  %v240 = vadd.f32 %v238, 1e-05
  %v241 = vrsqrt.pop %v239
  %v242 = vmul.f32 %v241, %v239
  %v243 = vmul.f32 %v242, %v241
  %v244 = vmul.f32 0.5, %v243
  %v245 = vsub.f32 1.5, %v244
  %v246 = vmul.f32 %v241, %v245
  %vm247 = vweird.f32 %v239
  %vm248 = vweird.f32 %v241
  %vm249 = vmor %vm247, %vm248
  %v250 = vsel %vm249, %v241, %v246
  %v251 = vrsqrt.pop %v240
  %v252 = vmul.f32 %v251, %v240
  %v253 = vmul.f32 %v252, %v251
  %v254 = vmul.f32 0.5, %v253
  %v255 = vsub.f32 1.5, %v254
  %v256 = vmul.f32 %v251, %v255
  %vm257 = vweird.f32 %v240
  %vm258 = vweird.f32 %v251
  %vm259 = vmor %vm257, %vm258
  %v260 = vsel %vm259, %v251, %v256
  %v261 = vmul.f32 %v227, %v250
  %v262 = vmul.f32 %v228, %v260
  %v264 = vperm.slane %v209, 0
  %v266 = vmul.f32 %v261, %v264
  %v267 = vmul.f32 %v262, %v264
  %v269 = vperm.slane %v210, 0
  %v271 = vadd.f32 %v266, %v269
  %v272 = vadd.f32 %v267, %v269
  %v273 = vld [vmem:[%s13] sm:$0xff]
  %v274 = vld [vmem:[%s13 + $0x8] sm:$0xff]
  %v275 = vld [vmem:[%s13 + $0x10] sm:$0xff]
  %v276 = vld [vmem:[%s13 + $0x18] sm:$0xff]
  %v278 = vsel %vm211, %v271, 0
  %v281 = vsel %vm211, %v272, 0
  %283 = vmatpush.msra.mxu0 0.0
  %284 = vmatpush.msra.mxu0 0.0
  %285 = vmatpush.msra.mxu0 0.0
  %286 = vmatpush.msra.mxu0 0.0
  %287 = vmatpush.msra.mxu0 0.0
  %288 = vmatpush.msra.mxu0 0.0
  %289 = vmatpush.msra.mxu0 0.0
  %290 = vmatpush.msra.mxu0 0.0
  %291 = vmatpush.msra.mxu0 0.0
  %292 = vmatpush.msra.mxu0 0.0
  %293 = vmatpush.msra.mxu0 0.0
  %294 = vmatpush.msra.mxu0 0.0
  %295 = vmatpush.msra.mxu0 %v276
  %296 = vmatpush.msra.mxu0 %v275
  %297 = vmatpush.msra.mxu0 %v274
  %298 = vmatpush.msra.mxu0 %v273
  %299 = vmatmul.f32.gmra.mxu0 %v278
  %v300 = vpop.f32.mrf.mxu0
  %v301 = vadd.f32 0.0, %v300
  %302 = vmatmul.f32.gmra.mxu0 %v281
  %v303 = vpop.f32.mrf.mxu0
  %v304 = vadd.f32 0.0, %v303
  %305 = vdwg.mxu0
  %308 = vrot.lane.b32.xlu0 %v301, 120
  %v309 = vpop.permute.xlu0 %308
  %310 = vrot.lane.b32.xlu0 %v304, 120
  %v311 = vpop.permute.xlu0 %310
  %312 = vrot.lane.b32.xlu0 %v301, 112
  %v313 = vpop.permute.xlu0 %312
  %314 = vrot.lane.b32.xlu0 %v304, 112
  %v315 = vpop.permute.xlu0 %314
  %316 = vrot.lane.b32.xlu0 %v301, 104
  %v317 = vpop.permute.xlu0 %316
  %318 = vrot.lane.b32.xlu0 %v304, 104
  %v319 = vpop.permute.xlu0 %318
  %v320 = vld [vmem:[%s5] sm:$0xff]
  %v321 = vld [vmem:[%s5 + $0x8] sm:$0xff]
  %v322 = vld [vmem:[%s5 + $0x10] sm:$0xff]
  %v323 = vld [vmem:[%s5 + $0x18] sm:$0xff]
  %v324 = vld [vmem:[%s5 + $0x20] sm:$0xff]
  %v325 = vld [vmem:[%s5 + $0x28] sm:$0xff]
  %v326 = vld [vmem:[%s5 + $0x30] sm:$0xff]
  %v327 = vld [vmem:[%s5 + $0x38] sm:$0xff]
  %328 = vrot.lane.b32.xlu0 %v301, 96
  %v329 = vpop.permute.xlu0 %328
  %330 = vrot.lane.b32.xlu0 %v304, 96
  %v331 = vpop.permute.xlu0 %330
  %332 = vrot.lane.b32.xlu0 %v309, 96
  %v333 = vpop.permute.xlu0 %332
  %334 = vrot.lane.b32.xlu0 %v311, 96
  %v335 = vpop.permute.xlu0 %334
  %336 = vrot.lane.b32.xlu0 %v313, 96
  %v337 = vpop.permute.xlu0 %336
  %338 = vrot.lane.b32.xlu0 %v315, 96
  %v339 = vpop.permute.xlu0 %338
  %340 = vrot.lane.b32.xlu0 %v317, 96
  %v341 = vpop.permute.xlu0 %340
  %342 = vrot.lane.b32.xlu0 %v319, 96
  %v343 = vpop.permute.xlu0 %342
  %vm344 = vcmask 64512
  %v345 = vsel %vm344, %v301, 0
  %v347 = vsel %vm344, %v304, 0
  %v349 = vsel %vm344, %v309, 0
  %v351 = vsel %vm344, %v311, 0
  %v353 = vsel %vm344, %v313, 0
  %v355 = vsel %vm344, %v315, 0
  %v357 = vsel %vm344, %v317, 0
  %v359 = vsel %vm344, %v319, 0
  %v361 = vsel %vm344, %v329, 0
  %v363 = vsel %vm344, %v331, 0
  %v365 = vsel %vm344, %v333, 0
  %v367 = vsel %vm344, %v335, 0
  %v369 = vsel %vm344, %v337, 0
  %v371 = vsel %vm344, %v339, 0
  %v373 = vsel %vm344, %v341, 0
  %v375 = vsel %vm344, %v343, 0
  %377 = vmatpush.xpose.msra.mxu0 0.0
  %378 = vmatpush.xpose.msra.mxu0 0.0
  %379 = vmatpush.xpose.msra.mxu0 0.0
  %380 = vmatpush.xpose.msra.mxu0 0.0
  %381 = vmatpush.xpose.msra.mxu0 0.0
  %382 = vmatpush.xpose.msra.mxu0 0.0
  %383 = vmatpush.xpose.msra.mxu0 0.0
  %384 = vmatpush.xpose.msra.mxu0 0.0
  %385 = vmatpush.xpose.msra.mxu0 %v375
  %386 = vmatpush.xpose.msra.mxu0 %v373
  %387 = vmatpush.xpose.msra.mxu0 %v371
  %388 = vmatpush.xpose.msra.mxu0 %v369
  %389 = vmatpush.xpose.msra.mxu0 %v367
  %390 = vmatpush.xpose.msra.mxu0 %v365
  %391 = vmatpush.xpose.msra.mxu0 %v363
  %392 = vmatpush.xpose.msra.mxu0 %v361
  %393 = vmatmul.f32.gmra.mxu0 %v345
  %v394 = vpop.f32.mrf.mxu0
  %v395 = vadd.f32 %v320, %v394
  %396 = vmatmul.f32.gmra.mxu0 %v347
  %v397 = vpop.f32.mrf.mxu0
  %v398 = vadd.f32 %v321, %v397
  %399 = vmatmul.f32.gmra.mxu0 %v349
  %v400 = vpop.f32.mrf.mxu0
  %v401 = vadd.f32 %v322, %v400
  %402 = vmatmul.f32.gmra.mxu0 %v351
  %v403 = vpop.f32.mrf.mxu0
  %v404 = vadd.f32 %v323, %v403
  %405 = vmatmul.f32.gmra.mxu0 %v353
  %v406 = vpop.f32.mrf.mxu0
  %v407 = vadd.f32 %v324, %v406
  %408 = vmatmul.f32.gmra.mxu0 %v355
  %v409 = vpop.f32.mrf.mxu0
  %v410 = vadd.f32 %v325, %v409
  %411 = vmatmul.f32.gmra.mxu0 %v357
  %v412 = vpop.f32.mrf.mxu0
  %v413 = vadd.f32 %v326, %v412
  %414 = vmatmul.f32.gmra.mxu0 %v359
  %v415 = vpop.f32.mrf.mxu0
  %v416 = vadd.f32 %v327, %v415
  %417 = vdwg.mxu0
  %v418 = vsel %vm156, %v395, -inf
  %419 = vmax.xlane.f32.xlu0 %v418
  %v420 = vpop.xlane.xlu0 %419
  %v421 = vsel %vm156, %v398, -inf
  %422 = vmax.xlane.f32.xlu0 %v421
  %v423 = vpop.xlane.xlu0 %422
  %v424 = vsel %vm156, %v401, -inf
  %425 = vmax.xlane.f32.xlu0 %v424
  %v426 = vpop.xlane.xlu0 %425
  %v427 = vsel %vm156, %v404, -inf
  %428 = vmax.xlane.f32.xlu0 %v427
  %v429 = vpop.xlane.xlu0 %428
  %v430 = vsel %vm156, %v407, -inf
  %431 = vmax.xlane.f32.xlu0 %v430
  %v432 = vpop.xlane.xlu0 %431
  %v433 = vsel %vm156, %v410, -inf
  %434 = vmax.xlane.f32.xlu0 %v433
  %v435 = vpop.xlane.xlu0 %434
  %v436 = vsel %vm156, %v413, -inf
  %437 = vmax.xlane.f32.xlu0 %v436
  %v438 = vpop.xlane.xlu0 %437
  %v439 = vsel %vm156, %v416, -inf
  %440 = vmax.xlane.f32.xlu0 %v439
  %v441 = vpop.xlane.xlu0 %440
  %v442 = vsub.f32 %v395, %v420
  %v443 = vsub.f32 %v398, %v423
  %v444 = vsub.f32 %v401, %v426
  %v445 = vsub.f32 %v404, %v429
  %v446 = vsub.f32 %v407, %v432
  %v447 = vsub.f32 %v410, %v435
  %v448 = vsub.f32 %v413, %v438
  %v449 = vsub.f32 %v416, %v441
  %v450 = vmul.f32 %v442, 1.442695
  %v451 = vpow.pop %v450
  %v452 = vmul.f32 %v443, 1.442695
  %v453 = vpow.pop %v452
  %v454 = vmul.f32 %v444, 1.442695
  %v455 = vpow.pop %v454
  %v456 = vmul.f32 %v445, 1.442695
  %v457 = vpow.pop %v456
  %v458 = vmul.f32 %v446, 1.442695
  %v459 = vpow.pop %v458
  %v460 = vmul.f32 %v447, 1.442695
  %v461 = vpow.pop %v460
  %v462 = vmul.f32 %v448, 1.442695
  %v463 = vpow.pop %v462
  %v464 = vmul.f32 %v449, 1.442695
  %v465 = vpow.pop %v464
  %v466 = vsel %vm156, %v451, 0.0
  %467 = vadd.xlane.f32.xlu0 %v466
  %v468 = vpop.xlane.xlu0 %467
  %v469 = vsel %vm156, %v453, 0.0
  %470 = vadd.xlane.f32.xlu0 %v469
  %v471 = vpop.xlane.xlu0 %470
  %v472 = vsel %vm156, %v455, 0.0
  %473 = vadd.xlane.f32.xlu0 %v472
  %v474 = vpop.xlane.xlu0 %473
  %v475 = vsel %vm156, %v457, 0.0
  %476 = vadd.xlane.f32.xlu0 %v475
  %v477 = vpop.xlane.xlu0 %476
  %v478 = vsel %vm156, %v459, 0.0
  %479 = vadd.xlane.f32.xlu0 %v478
  %v480 = vpop.xlane.xlu0 %479
  %v481 = vsel %vm156, %v461, 0.0
  %482 = vadd.xlane.f32.xlu0 %v481
  %v483 = vpop.xlane.xlu0 %482
  %v484 = vsel %vm156, %v463, 0.0
  %485 = vadd.xlane.f32.xlu0 %v484
  %v486 = vpop.xlane.xlu0 %485
  %v487 = vsel %vm156, %v465, 0.0
  %488 = vadd.xlane.f32.xlu0 %v487
  %v489 = vpop.xlane.xlu0 %488
  %v490 = vrcp.pop %v468
  %v491 = vrcp.pop %v471
  %v492 = vrcp.pop %v474
  %v493 = vrcp.pop %v477
  %v494 = vrcp.pop %v480
  %v495 = vrcp.pop %v483
  %v496 = vrcp.pop %v486
  %v497 = vrcp.pop %v489
  %v498 = vmul.f32 %v451, %v490
  %v499 = vmul.f32 %v453, %v491
  %v500 = vmul.f32 %v455, %v492
  %v501 = vmul.f32 %v457, %v493
  %v502 = vmul.f32 %v459, %v494
  %v503 = vmul.f32 %v461, %v495
  %v504 = vmul.f32 %v463, %v496
  %v505 = vmul.f32 %v465, %v497
  %506 = vrot.lane.b32.xlu0 %v301, 64
  %v507 = vpop.permute.xlu0 %506
  %508 = vrot.lane.b32.xlu0 %v304, 64
  %v509 = vpop.permute.xlu0 %508
  %510 = vrot.lane.b32.xlu0 %v309, 64
  %v511 = vpop.permute.xlu0 %510
  %512 = vrot.lane.b32.xlu0 %v311, 64
  %v513 = vpop.permute.xlu0 %512
  %514 = vrot.lane.b32.xlu0 %v313, 64
  %v515 = vpop.permute.xlu0 %514
  %516 = vrot.lane.b32.xlu0 %v315, 64
  %v517 = vpop.permute.xlu0 %516
  %518 = vrot.lane.b32.xlu0 %v317, 64
  %v519 = vpop.permute.xlu0 %518
  %520 = vrot.lane.b32.xlu0 %v319, 64
  %v521 = vpop.permute.xlu0 %520
  %v531 = vsel %vm156, %v498, 0
  %v534 = vsel %vm156, %v499, 0
  %v537 = vsel %vm156, %v500, 0
  %v540 = vsel %vm156, %v501, 0
  %v543 = vsel %vm156, %v502, 0
  %v546 = vsel %vm156, %v503, 0
  %v549 = vsel %vm156, %v504, 0
  %v552 = vsel %vm156, %v505, 0
  %554 = vmatpush.msra.mxu0 0.0
  %555 = vmatpush.msra.mxu0 0.0
  %556 = vmatpush.msra.mxu0 0.0
  %557 = vmatpush.msra.mxu0 0.0
  %558 = vmatpush.msra.mxu0 0.0
  %559 = vmatpush.msra.mxu0 0.0
  %560 = vmatpush.msra.mxu0 0.0
  %561 = vmatpush.msra.mxu0 0.0
  %562 = vmatpush.msra.mxu0 %v521
  %563 = vmatpush.msra.mxu0 %v519
  %564 = vmatpush.msra.mxu0 %v517
  %565 = vmatpush.msra.mxu0 %v515
  %566 = vmatpush.msra.mxu0 %v513
  %567 = vmatpush.msra.mxu0 %v511
  %568 = vmatpush.msra.mxu0 %v509
  %569 = vmatpush.msra.mxu0 %v507
  %570 = vmatmul.f32.gmra.mxu0 %v531
  %v571 = vpop.f32.mrf.mxu0
  %v572 = vadd.f32 0.0, %v571
  %573 = vmatmul.f32.gmra.mxu0 %v534
  %v574 = vpop.f32.mrf.mxu0
  %v575 = vadd.f32 0.0, %v574
  %576 = vmatmul.f32.gmra.mxu0 %v537
  %v577 = vpop.f32.mrf.mxu0
  %v578 = vadd.f32 0.0, %v577
  %579 = vmatmul.f32.gmra.mxu0 %v540
  %v580 = vpop.f32.mrf.mxu0
  %v581 = vadd.f32 0.0, %v580
  %582 = vmatmul.f32.gmra.mxu0 %v543
  %v583 = vpop.f32.mrf.mxu0
  %v584 = vadd.f32 0.0, %v583
  %585 = vmatmul.f32.gmra.mxu0 %v546
  %v586 = vpop.f32.mrf.mxu0
  %v587 = vadd.f32 0.0, %v586
  %588 = vmatmul.f32.gmra.mxu0 %v549
  %v589 = vpop.f32.mrf.mxu0
  %v590 = vadd.f32 0.0, %v589
  %591 = vmatmul.f32.gmra.mxu0 %v552
  %v592 = vpop.f32.mrf.mxu0
  %v593 = vadd.f32 0.0, %v592
  %594 = vdwg.mxu0
  %597 = vrot.lane.b32.xlu0 %v578, 8
  %v598 = vpop.permute.xlu0 %597
  %599 = vrot.lane.b32.xlu0 %v581, 8
  %v600 = vpop.permute.xlu0 %599
  %605 = vrot.lane.b32.xlu0 %v584, 16
  %v606 = vpop.permute.xlu0 %605
  %607 = vrot.lane.b32.xlu0 %v587, 16
  %v608 = vpop.permute.xlu0 %607
  %613 = vrot.lane.b32.xlu0 %v590, 24
  %v614 = vpop.permute.xlu0 %613
  %615 = vrot.lane.b32.xlu0 %v593, 24
  %v616 = vpop.permute.xlu0 %615
  %v619 = vsel %vm344, %v572, %v598
  %v620 = vsel %vm344, %v575, %v600
  %vm621 = vcmask 130048
  %v622 = vsel %vm621, %v619, %v606
  %v623 = vsel %vm621, %v620, %v608
  %vm624 = vcmask 195584
  %v625 = vsel %vm624, %v622, %v614
  %v626 = vsel %vm624, %v623, %v616
  %v627 = vld [vmem:[%s15] sm:$0xff]
  %v628 = vld [vmem:[%s15 + $0x8] sm:$0xff]
  %v629 = vld [vmem:[%s15 + $0x10] sm:$0xff]
  %v630 = vld [vmem:[%s15 + $0x18] sm:$0xff]
  %v632 = vsel %vm211, %v625, 0
  %v635 = vsel %vm211, %v626, 0
  %637 = vmatpush.msra.mxu0 0.0
  %638 = vmatpush.msra.mxu0 0.0
  %639 = vmatpush.msra.mxu0 0.0
  %640 = vmatpush.msra.mxu0 0.0
  %641 = vmatpush.msra.mxu0 0.0
  %642 = vmatpush.msra.mxu0 0.0
  %643 = vmatpush.msra.mxu0 0.0
  %644 = vmatpush.msra.mxu0 0.0
  %645 = vmatpush.msra.mxu0 0.0
  %646 = vmatpush.msra.mxu0 0.0
  %647 = vmatpush.msra.mxu0 0.0
  %648 = vmatpush.msra.mxu0 0.0
  %649 = vmatpush.msra.mxu0 %v630
  %650 = vmatpush.msra.mxu0 %v629
  %651 = vmatpush.msra.mxu0 %v628
  %652 = vmatpush.msra.mxu0 %v627
  %653 = vmatmul.f32.gmra.mxu0 %v632
  %v654 = vpop.f32.mrf.mxu0
  %v655 = vadd.f32 0.0, %v654
  %656 = vmatmul.f32.gmra.mxu0 %v635
  %v657 = vpop.f32.mrf.mxu0
  %v658 = vadd.f32 0.0, %v657
  %659 = vdwg.mxu0
  %v660 = vadd.f32 %v204, %v655
  %v661 = vadd.f32 %v207, %v658
  %v662 = vld [vmem:[%s17] sm:$0x1]
  %v664 = vperm.slane %v662, 0
  %v666 = vadd.f32 %v660, %v664
  %v667 = vadd.f32 %v661, %v664
  %v668 = vld [vmem:[%s19] sm:$0x1]
  %v669 = vld [vmem:[%s21] sm:$0x1]
  %v670 = vsel %vm211, %v666, 0.0
  %671 = vadd.xlane.f32.xlu0 %v670
  %v672 = vpop.xlane.xlu0 %671
  %v673 = vsel %vm211, %v667, 0.0
  %674 = vadd.xlane.f32.xlu0 %v673
  %v675 = vpop.xlane.xlu0 %674
  %v676 = vmul.f32 %v672, %v224
  %v677 = vmul.f32 %v675, %v224
  %v678 = vsub.f32 %v666, %v676
  %v679 = vsub.f32 %v667, %v677
  %v680 = vmul.f32 %v678, %v678
  %v681 = vmul.f32 %v679, %v679
  %v682 = vsel %vm211, %v680, 0.0
  %683 = vadd.xlane.f32.xlu0 %v682
  %v684 = vpop.xlane.xlu0 %683
  %v685 = vsel %vm211, %v681, 0.0
  %686 = vadd.xlane.f32.xlu0 %v685
  %v687 = vpop.xlane.xlu0 %686
  %v688 = vmul.f32 %v684, %v224
  %v689 = vmul.f32 %v687, %v224
  %v690 = vadd.f32 %v688, 1e-05
  %v691 = vadd.f32 %v689, 1e-05
  %v692 = vrsqrt.pop %v690
  %v693 = vmul.f32 %v692, %v690
  %v694 = vmul.f32 %v693, %v692
  %v695 = vmul.f32 0.5, %v694
  %v696 = vsub.f32 1.5, %v695
  %v697 = vmul.f32 %v692, %v696
  %vm698 = vweird.f32 %v690
  %vm699 = vweird.f32 %v692
  %vm700 = vmor %vm698, %vm699
  %v701 = vsel %vm700, %v692, %v697
  %v702 = vrsqrt.pop %v691
  %v703 = vmul.f32 %v702, %v691
  %v704 = vmul.f32 %v703, %v702
  %v705 = vmul.f32 0.5, %v704
  %v706 = vsub.f32 1.5, %v705
  %v707 = vmul.f32 %v702, %v706
  %vm708 = vweird.f32 %v691
  %vm709 = vweird.f32 %v702
  %vm710 = vmor %vm708, %vm709
  %v711 = vsel %vm710, %v702, %v707
  %v712 = vmul.f32 %v678, %v701
  %v713 = vmul.f32 %v679, %v711
  %v715 = vperm.slane %v668, 0
  %v717 = vmul.f32 %v712, %v715
  %v718 = vmul.f32 %v713, %v715
  %v720 = vperm.slane %v669, 0
  %v722 = vadd.f32 %v717, %v720
  %v723 = vadd.f32 %v718, %v720
  %v724 = vld [vmem:[%s23] sm:$0xff]
  %v725 = vld [vmem:[%s23 + $0x8] sm:$0xff]
  %v726 = vld [vmem:[%s23 + $0x10] sm:$0xff]
  %v727 = vld [vmem:[%s23 + $0x18] sm:$0xff]
  %v728 = vld [vmem:[%s25] sm:$0x1]
  %v730 = vperm.slane %v728, 0
  %v733 = vsel %vm211, %v722, 0
  %v736 = vsel %vm211, %v723, 0
  %738 = vmatpush.msra.mxu0 0.0
  %739 = vmatpush.msra.mxu0 0.0
  %740 = vmatpush.msra.mxu0 0.0
  %741 = vmatpush.msra.mxu0 0.0
  %742 = vmatpush.msra.mxu0 0.0
  %743 = vmatpush.msra.mxu0 0.0
  %744 = vmatpush.msra.mxu0 0.0
  %745 = vmatpush.msra.mxu0 0.0
  %746 = vmatpush.msra.mxu0 0.0
  %747 = vmatpush.msra.mxu0 0.0
  %748 = vmatpush.msra.mxu0 0.0
  %749 = vmatpush.msra.mxu0 0.0
  %750 = vmatpush.msra.mxu0 %v727
  %751 = vmatpush.msra.mxu0 %v726
  %752 = vmatpush.msra.mxu0 %v725
  %753 = vmatpush.msra.mxu0 %v724
  %754 = vmatmul.f32.gmra.mxu0 %v733
  %v755 = vpop.f32.mrf.mxu0
  %v756 = vadd.f32 %v730, %v755
  %757 = vmatmul.f32.gmra.mxu0 %v736
  %v758 = vpop.f32.mrf.mxu0
  %v759 = vadd.f32 %v730, %v758
  %760 = vdwg.mxu0
  %v761 = vmul.f32 %v756, 0.5
  %v762 = vmul.f32 %v759, 0.5
  %v763 = vmul.f32 %v756, 0.044715
  %v764 = vmul.f32 %v759, 0.044715
  %v765 = vmul.f32 %v763, %v756
  %v766 = vmul.f32 %v764, %v759
  %v767 = vmul.f32 %v765, %v756
  %v768 = vmul.f32 %v766, %v759
  %v769 = vadd.f32 %v756, %v767
  %v770 = vadd.f32 %v759, %v768
  %v771 = vmul.f32 %v769, 0.7978846
  %v772 = vmul.f32 %v770, 0.7978846
  %v773 = vtanh.pop %v771
  %v774 = vtanh.pop %v772
  %v775 = vadd.f32 %v773, 1.0
  %v776 = vadd.f32 %v774, 1.0
  %v777 = vmul.f32 %v761, %v775
  %v778 = vmul.f32 %v762, %v776
  %v779 = vld [vmem:[%s27] sm:$0xff]
  %v780 = vld [vmem:[%s27 + $0x8] sm:$0xff]
  %v781 = vld [vmem:[%s27 + $0x10] sm:$0xff]
  %v782 = vld [vmem:[%s27 + $0x18] sm:$0xff]
  %v783 = vld [vmem:[%s27 + $0x20] sm:$0xff]
  %v784 = vld [vmem:[%s27 + $0x28] sm:$0xff]
  %v785 = vld [vmem:[%s27 + $0x30] sm:$0xff]
  %v786 = vld [vmem:[%s27 + $0x38] sm:$0xff]
  %v787 = vld [vmem:[%s27 + $0x40] sm:$0xff]
  %v788 = vld [vmem:[%s27 + $0x48] sm:$0xff]
  %v789 = vld [vmem:[%s27 + $0x50] sm:$0xff]
  %v790 = vld [vmem:[%s27 + $0x58] sm:$0xff]
  %v791 = vld [vmem:[%s27 + $0x60] sm:$0xff]
  %v792 = vld [vmem:[%s27 + $0x68] sm:$0xff]
  %v793 = vld [vmem:[%s27 + $0x70] sm:$0xff]
  %v794 = vld [vmem:[%s27 + $0x78] sm:$0xff]
  %795 = vmatpush.msra.mxu0 %v794
  %796 = vmatpush.msra.mxu0 %v793
  %797 = vmatpush.msra.mxu0 %v792
  %798 = vmatpush.msra.mxu0 %v791
  %799 = vmatpush.msra.mxu0 %v790
  %800 = vmatpush.msra.mxu0 %v789
  %801 = vmatpush.msra.mxu0 %v788
  %802 = vmatpush.msra.mxu0 %v787
  %803 = vmatpush.msra.mxu0 %v786
  %804 = vmatpush.msra.mxu0 %v785
  %805 = vmatpush.msra.mxu0 %v784
  %806 = vmatpush.msra.mxu0 %v783
  %807 = vmatpush.msra.mxu0 %v782
  %808 = vmatpush.msra.mxu0 %v781
  %809 = vmatpush.msra.mxu0 %v780
  %810 = vmatpush.msra.mxu0 %v779
  %811 = vmatmul.f32.gmra.mxu0 %v777
  %v812 = vpop.f32.mrf.mxu0
  %v813 = vadd.f32 0.0, %v812
  %814 = vmatmul.f32.gmra.mxu0 %v778
  %v815 = vpop.f32.mrf.mxu0
  %v816 = vadd.f32 0.0, %v815
  %817 = vdwg.mxu0
  %v818 = vadd.f32 %v666, %v813
  %v819 = vadd.f32 %v667, %v816
  %v820 = vld [vmem:[%s29] sm:$0x1]
  %v822 = vperm.slane %v820, 0
  %v824 = vadd.f32 %v818, %v822
  %v825 = vadd.f32 %v819, %v822
  %v826 = vld [vmem:[%s31] sm:$0x1]
  %v827 = vld [vmem:[%s33] sm:$0x1]
  %v828 = vsel %vm211, %v824, 0.0
  %829 = vadd.xlane.f32.xlu0 %v828
  %v830 = vpop.xlane.xlu0 %829
  %v831 = vsel %vm211, %v825, 0.0
  %832 = vadd.xlane.f32.xlu0 %v831
  %v833 = vpop.xlane.xlu0 %832
  %v834 = vmul.f32 %v830, %v224
  %v835 = vmul.f32 %v833, %v224
  %v836 = vsub.f32 %v824, %v834
  %v837 = vsub.f32 %v825, %v835
  %v838 = vmul.f32 %v836, %v836
  %v839 = vmul.f32 %v837, %v837
  %v840 = vsel %vm211, %v838, 0.0
  %841 = vadd.xlane.f32.xlu0 %v840
  %v842 = vpop.xlane.xlu0 %841
  %v843 = vsel %vm211, %v839, 0.0
  %844 = vadd.xlane.f32.xlu0 %v843
  %v845 = vpop.xlane.xlu0 %844
  %v846 = vmul.f32 %v842, %v224
  %v847 = vmul.f32 %v845, %v224
  %v848 = vadd.f32 %v846, 1e-05
  %v849 = vadd.f32 %v847, 1e-05
  %v850 = vrsqrt.pop %v848
  %v851 = vmul.f32 %v850, %v848
  %v852 = vmul.f32 %v851, %v850
  %v853 = vmul.f32 0.5, %v852
  %v854 = vsub.f32 1.5, %v853
  %v855 = vmul.f32 %v850, %v854
  %vm856 = vweird.f32 %v848
  %vm857 = vweird.f32 %v850
  %vm858 = vmor %vm856, %vm857
  %v859 = vsel %vm858, %v850, %v855
  %v860 = vrsqrt.pop %v849
  %v861 = vmul.f32 %v860, %v849
  %v862 = vmul.f32 %v861, %v860
  %v863 = vmul.f32 0.5, %v862
  %v864 = vsub.f32 1.5, %v863
  %v865 = vmul.f32 %v860, %v864
  %vm866 = vweird.f32 %v849
  %vm867 = vweird.f32 %v860
  %vm868 = vmor %vm866, %vm867
  %v869 = vsel %vm868, %v860, %v865
  %v870 = vmul.f32 %v836, %v859
  %v871 = vmul.f32 %v837, %v869
  %v873 = vperm.slane %v826, 0
  %v875 = vmul.f32 %v870, %v873
  %v876 = vmul.f32 %v871, %v873
  %v878 = vperm.slane %v827, 0
  %v880 = vadd.f32 %v875, %v878
  %v881 = vadd.f32 %v876, %v878
  %v882 = vld [vmem:[%s35] sm:$0xff]
  %v883 = vld [vmem:[%s35 + $0x8] sm:$0xff]
  %v884 = vld [vmem:[%s35 + $0x10] sm:$0xff]
  %v885 = vld [vmem:[%s35 + $0x18] sm:$0xff]
  %v887 = vsel %vm211, %v880, 0
  %v890 = vsel %vm211, %v881, 0
  %892 = vmatpush.msra.mxu0 0.0
  %893 = vmatpush.msra.mxu0 0.0
  %894 = vmatpush.msra.mxu0 0.0
  %895 = vmatpush.msra.mxu0 0.0
  %896 = vmatpush.msra.mxu0 0.0
  %897 = vmatpush.msra.mxu0 0.0
  %898 = vmatpush.msra.mxu0 0.0
  %899 = vmatpush.msra.mxu0 0.0
  %900 = vmatpush.msra.mxu0 0.0
  %901 = vmatpush.msra.mxu0 0.0
  %902 = vmatpush.msra.mxu0 0.0
  %903 = vmatpush.msra.mxu0 0.0
  %904 = vmatpush.msra.mxu0 %v885
  %905 = vmatpush.msra.mxu0 %v884
  %906 = vmatpush.msra.mxu0 %v883
  %907 = vmatpush.msra.mxu0 %v882
  %908 = vmatmul.f32.gmra.mxu0 %v887
  %v909 = vpop.f32.mrf.mxu0
  %v910 = vadd.f32 0.0, %v909
  %911 = vmatmul.f32.gmra.mxu0 %v890
  %v912 = vpop.f32.mrf.mxu0
  %v913 = vadd.f32 0.0, %v912
  %914 = vdwg.mxu0
  %917 = vrot.lane.b32.xlu0 %v910, 120
  %v918 = vpop.permute.xlu0 %917
  %919 = vrot.lane.b32.xlu0 %v913, 120
  %v920 = vpop.permute.xlu0 %919
  %921 = vrot.lane.b32.xlu0 %v910, 112
  %v922 = vpop.permute.xlu0 %921
  %923 = vrot.lane.b32.xlu0 %v913, 112
  %v924 = vpop.permute.xlu0 %923
  %925 = vrot.lane.b32.xlu0 %v910, 104
  %v926 = vpop.permute.xlu0 %925
  %927 = vrot.lane.b32.xlu0 %v913, 104
  %v928 = vpop.permute.xlu0 %927
  %929 = vrot.lane.b32.xlu0 %v910, 96
  %v930 = vpop.permute.xlu0 %929
  %931 = vrot.lane.b32.xlu0 %v913, 96
  %v932 = vpop.permute.xlu0 %931
  %933 = vrot.lane.b32.xlu0 %v918, 96
  %v934 = vpop.permute.xlu0 %933
  %935 = vrot.lane.b32.xlu0 %v920, 96
  %v936 = vpop.permute.xlu0 %935
  %937 = vrot.lane.b32.xlu0 %v922, 96
  %v938 = vpop.permute.xlu0 %937
  %939 = vrot.lane.b32.xlu0 %v924, 96
  %v940 = vpop.permute.xlu0 %939
  %941 = vrot.lane.b32.xlu0 %v926, 96
  %v942 = vpop.permute.xlu0 %941
  %943 = vrot.lane.b32.xlu0 %v928, 96
  %v944 = vpop.permute.xlu0 %943
  %v945 = vsel %vm344, %v910, 0
  %v947 = vsel %vm344, %v913, 0
  %v949 = vsel %vm344, %v918, 0
  %v951 = vsel %vm344, %v920, 0
  %v953 = vsel %vm344, %v922, 0
  %v955 = vsel %vm344, %v924, 0
  %v957 = vsel %vm344, %v926, 0
  %v959 = vsel %vm344, %v928, 0
  %v961 = vsel %vm344, %v930, 0
  %v963 = vsel %vm344, %v932, 0
  %v965 = vsel %vm344, %v934, 0
  %v967 = vsel %vm344, %v936, 0
  %v969 = vsel %vm344, %v938, 0
  %v971 = vsel %vm344, %v940, 0
  %v973 = vsel %vm344, %v942, 0
  %v975 = vsel %vm344, %v944, 0
  %977 = vmatpush.xpose.msra.mxu0 0.0
  %978 = vmatpush.xpose.msra.mxu0 0.0
  %979 = vmatpush.xpose.msra.mxu0 0.0
  %980 = vmatpush.xpose.msra.mxu0 0.0
  %981 = vmatpush.xpose.msra.mxu0 0.0
  %982 = vmatpush.xpose.msra.mxu0 0.0
  %983 = vmatpush.xpose.msra.mxu0 0.0
  %984 = vmatpush.xpose.msra.mxu0 0.0
  %985 = vmatpush.xpose.msra.mxu0 %v975
  %986 = vmatpush.xpose.msra.mxu0 %v973
  %987 = vmatpush.xpose.msra.mxu0 %v971
  %988 = vmatpush.xpose.msra.mxu0 %v969
  %989 = vmatpush.xpose.msra.mxu0 %v967
  %990 = vmatpush.xpose.msra.mxu0 %v965
  %991 = vmatpush.xpose.msra.mxu0 %v963
  %992 = vmatpush.xpose.msra.mxu0 %v961
  %993 = vmatmul.f32.gmra.mxu0 %v945
  %v994 = vpop.f32.mrf.mxu0
  %v995 = vadd.f32 %v320, %v994
  %996 = vmatmul.f32.gmra.mxu0 %v947
  %v997 = vpop.f32.mrf.mxu0
  %v998 = vadd.f32 %v321, %v997
  %999 = vmatmul.f32.gmra.mxu0 %v949
  %v1000 = vpop.f32.mrf.mxu0
  %v1001 = vadd.f32 %v322, %v1000
  %1002 = vmatmul.f32.gmra.mxu0 %v951
  %v1003 = vpop.f32.mrf.mxu0
  %v1004 = vadd.f32 %v323, %v1003
  %1005 = vmatmul.f32.gmra.mxu0 %v953
  %v1006 = vpop.f32.mrf.mxu0
  %v1007 = vadd.f32 %v324, %v1006
  %1008 = vmatmul.f32.gmra.mxu0 %v955
  %v1009 = vpop.f32.mrf.mxu0
  %v1010 = vadd.f32 %v325, %v1009
  %1011 = vmatmul.f32.gmra.mxu0 %v957
  %v1012 = vpop.f32.mrf.mxu0
  %v1013 = vadd.f32 %v326, %v1012
  %1014 = vmatmul.f32.gmra.mxu0 %v959
  %v1015 = vpop.f32.mrf.mxu0
  %v1016 = vadd.f32 %v327, %v1015
  %1017 = vdwg.mxu0
  %v1018 = vsel %vm156, %v995, -inf
  %1019 = vmax.xlane.f32.xlu0 %v1018
  %v1020 = vpop.xlane.xlu0 %1019
  %v1021 = vsel %vm156, %v998, -inf
  %1022 = vmax.xlane.f32.xlu0 %v1021
  %v1023 = vpop.xlane.xlu0 %1022
  %v1024 = vsel %vm156, %v1001, -inf
  %1025 = vmax.xlane.f32.xlu0 %v1024
  %v1026 = vpop.xlane.xlu0 %1025
  %v1027 = vsel %vm156, %v1004, -inf
  %1028 = vmax.xlane.f32.xlu0 %v1027
  %v1029 = vpop.xlane.xlu0 %1028
  %v1030 = vsel %vm156, %v1007, -inf
  %1031 = vmax.xlane.f32.xlu0 %v1030
  %v1032 = vpop.xlane.xlu0 %1031
  %v1033 = vsel %vm156, %v1010, -inf
  %1034 = vmax.xlane.f32.xlu0 %v1033
  %v1035 = vpop.xlane.xlu0 %1034
  %v1036 = vsel %vm156, %v1013, -inf
  %1037 = vmax.xlane.f32.xlu0 %v1036
  %v1038 = vpop.xlane.xlu0 %1037
  %v1039 = vsel %vm156, %v1016, -inf
  %1040 = vmax.xlane.f32.xlu0 %v1039
  %v1041 = vpop.xlane.xlu0 %1040
  %v1042 = vsub.f32 %v995, %v1020
  %v1043 = vsub.f32 %v998, %v1023
  %v1044 = vsub.f32 %v1001, %v1026
  %v1045 = vsub.f32 %v1004, %v1029
  %v1046 = vsub.f32 %v1007, %v1032
  %v1047 = vsub.f32 %v1010, %v1035
  %v1048 = vsub.f32 %v1013, %v1038
  %v1049 = vsub.f32 %v1016, %v1041
  %v1050 = vmul.f32 %v1042, 1.442695
  %v1051 = vpow.pop %v1050
  %v1052 = vmul.f32 %v1043, 1.442695
  %v1053 = vpow.pop %v1052
  %v1054 = vmul.f32 %v1044, 1.442695
  %v1055 = vpow.pop %v1054
  %v1056 = vmul.f32 %v1045, 1.442695
  %v1057 = vpow.pop %v1056
  %v1058 = vmul.f32 %v1046, 1.442695
  %v1059 = vpow.pop %v1058
  %v1060 = vmul.f32 %v1047, 1.442695
  %v1061 = vpow.pop %v1060
  %v1062 = vmul.f32 %v1048, 1.442695
  %v1063 = vpow.pop %v1062
  %v1064 = vmul.f32 %v1049, 1.442695
  %v1065 = vpow.pop %v1064
  %v1066 = vsel %vm156, %v1051, 0.0
  %1067 = vadd.xlane.f32.xlu0 %v1066
  %v1068 = vpop.xlane.xlu0 %1067
  %v1069 = vsel %vm156, %v1053, 0.0
  %1070 = vadd.xlane.f32.xlu0 %v1069
  %v1071 = vpop.xlane.xlu0 %1070
  %v1072 = vsel %vm156, %v1055, 0.0
  %1073 = vadd.xlane.f32.xlu0 %v1072
  %v1074 = vpop.xlane.xlu0 %1073
  %v1075 = vsel %vm156, %v1057, 0.0
  %1076 = vadd.xlane.f32.xlu0 %v1075
  %v1077 = vpop.xlane.xlu0 %1076
  %v1078 = vsel %vm156, %v1059, 0.0
  %1079 = vadd.xlane.f32.xlu0 %v1078
  %v1080 = vpop.xlane.xlu0 %1079
  %v1081 = vsel %vm156, %v1061, 0.0
  %1082 = vadd.xlane.f32.xlu0 %v1081
  %v1083 = vpop.xlane.xlu0 %1082
  %v1084 = vsel %vm156, %v1063, 0.0
  %1085 = vadd.xlane.f32.xlu0 %v1084
  %v1086 = vpop.xlane.xlu0 %1085
  %v1087 = vsel %vm156, %v1065, 0.0
  %1088 = vadd.xlane.f32.xlu0 %v1087
  %v1089 = vpop.xlane.xlu0 %1088
  %v1090 = vrcp.pop %v1068
  %v1091 = vrcp.pop %v1071
  %v1092 = vrcp.pop %v1074
  %v1093 = vrcp.pop %v1077
  %v1094 = vrcp.pop %v1080
  %v1095 = vrcp.pop %v1083
  %v1096 = vrcp.pop %v1086
  %v1097 = vrcp.pop %v1089
  %v1098 = vmul.f32 %v1051, %v1090
  %v1099 = vmul.f32 %v1053, %v1091
  %v1100 = vmul.f32 %v1055, %v1092
  %v1101 = vmul.f32 %v1057, %v1093
  %v1102 = vmul.f32 %v1059, %v1094
  %v1103 = vmul.f32 %v1061, %v1095
  %v1104 = vmul.f32 %v1063, %v1096
  %v1105 = vmul.f32 %v1065, %v1097
  %1106 = vrot.lane.b32.xlu0 %v910, 64
  %v1107 = vpop.permute.xlu0 %1106
  %1108 = vrot.lane.b32.xlu0 %v913, 64
  %v1109 = vpop.permute.xlu0 %1108
  %1110 = vrot.lane.b32.xlu0 %v918, 64
  %v1111 = vpop.permute.xlu0 %1110
  %1112 = vrot.lane.b32.xlu0 %v920, 64
  %v1113 = vpop.permute.xlu0 %1112
  %1114 = vrot.lane.b32.xlu0 %v922, 64
  %v1115 = vpop.permute.xlu0 %1114
  %1116 = vrot.lane.b32.xlu0 %v924, 64
  %v1117 = vpop.permute.xlu0 %1116
  %1118 = vrot.lane.b32.xlu0 %v926, 64
  %v1119 = vpop.permute.xlu0 %1118
  %1120 = vrot.lane.b32.xlu0 %v928, 64
  %v1121 = vpop.permute.xlu0 %1120
  %v1131 = vsel %vm156, %v1098, 0
  %v1134 = vsel %vm156, %v1099, 0
  %v1137 = vsel %vm156, %v1100, 0
  %v1140 = vsel %vm156, %v1101, 0
  %v1143 = vsel %vm156, %v1102, 0
  %v1146 = vsel %vm156, %v1103, 0
  %v1149 = vsel %vm156, %v1104, 0
  %v1152 = vsel %vm156, %v1105, 0
  %1154 = vmatpush.msra.mxu0 0.0
  %1155 = vmatpush.msra.mxu0 0.0
  %1156 = vmatpush.msra.mxu0 0.0
  %1157 = vmatpush.msra.mxu0 0.0
  %1158 = vmatpush.msra.mxu0 0.0
  %1159 = vmatpush.msra.mxu0 0.0
  %1160 = vmatpush.msra.mxu0 0.0
  %1161 = vmatpush.msra.mxu0 0.0
  %1162 = vmatpush.msra.mxu0 %v1121
  %1163 = vmatpush.msra.mxu0 %v1119
  %1164 = vmatpush.msra.mxu0 %v1117
  %1165 = vmatpush.msra.mxu0 %v1115
  %1166 = vmatpush.msra.mxu0 %v1113
  %1167 = vmatpush.msra.mxu0 %v1111
  %1168 = vmatpush.msra.mxu0 %v1109
  %1169 = vmatpush.msra.mxu0 %v1107
  %1170 = vmatmul.f32.gmra.mxu0 %v1131
  %v1171 = vpop.f32.mrf.mxu0
  %v1172 = vadd.f32 0.0, %v1171
  %1173 = vmatmul.f32.gmra.mxu0 %v1134
  %v1174 = vpop.f32.mrf.mxu0
  %v1175 = vadd.f32 0.0, %v1174
  %1176 = vmatmul.f32.gmra.mxu0 %v1137
  %v1177 = vpop.f32.mrf.mxu0
  %v1178 = vadd.f32 0.0, %v1177
  %1179 = vmatmul.f32.gmra.mxu0 %v1140
  %v1180 = vpop.f32.mrf.mxu0
  %v1181 = vadd.f32 0.0, %v1180
  %1182 = vmatmul.f32.gmra.mxu0 %v1143
  %v1183 = vpop.f32.mrf.mxu0
  %v1184 = vadd.f32 0.0, %v1183
  %1185 = vmatmul.f32.gmra.mxu0 %v1146
  %v1186 = vpop.f32.mrf.mxu0
  %v1187 = vadd.f32 0.0, %v1186
  %1188 = vmatmul.f32.gmra.mxu0 %v1149
  %v1189 = vpop.f32.mrf.mxu0
  %v1190 = vadd.f32 0.0, %v1189
  %1191 = vmatmul.f32.gmra.mxu0 %v1152
  %v1192 = vpop.f32.mrf.mxu0
  %v1193 = vadd.f32 0.0, %v1192
  %1194 = vdwg.mxu0
  %1197 = vrot.lane.b32.xlu0 %v1178, 8
  %v1198 = vpop.permute.xlu0 %1197
  %1199 = vrot.lane.b32.xlu0 %v1181, 8
  %v1200 = vpop.permute.xlu0 %1199
  %1205 = vrot.lane.b32.xlu0 %v1184, 16
  %v1206 = vpop.permute.xlu0 %1205
  %1207 = vrot.lane.b32.xlu0 %v1187, 16
  %v1208 = vpop.permute.xlu0 %1207
  %1213 = vrot.lane.b32.xlu0 %v1190, 24
  %v1214 = vpop.permute.xlu0 %1213
  %1215 = vrot.lane.b32.xlu0 %v1193, 24
  %v1216 = vpop.permute.xlu0 %1215
  %v1219 = vsel %vm344, %v1172, %v1198
  %v1220 = vsel %vm344, %v1175, %v1200
  %v1221 = vsel %vm621, %v1219, %v1206
  %v1222 = vsel %vm621, %v1220, %v1208
  %v1223 = vsel %vm624, %v1221, %v1214
  %v1224 = vsel %vm624, %v1222, %v1216
  %v1225 = vld [vmem:[%s37] sm:$0xff]
  %v1226 = vld [vmem:[%s37 + $0x8] sm:$0xff]
  %v1227 = vld [vmem:[%s37 + $0x10] sm:$0xff]
  %v1228 = vld [vmem:[%s37 + $0x18] sm:$0xff]
  %v1230 = vsel %vm211, %v1223, 0
  %v1233 = vsel %vm211, %v1224, 0
  %1235 = vmatpush.msra.mxu0 0.0
  %1236 = vmatpush.msra.mxu0 0.0
  %1237 = vmatpush.msra.mxu0 0.0
  %1238 = vmatpush.msra.mxu0 0.0
  %1239 = vmatpush.msra.mxu0 0.0
  %1240 = vmatpush.msra.mxu0 0.0
  %1241 = vmatpush.msra.mxu0 0.0
  %1242 = vmatpush.msra.mxu0 0.0
  %1243 = vmatpush.msra.mxu0 0.0
  %1244 = vmatpush.msra.mxu0 0.0
  %1245 = vmatpush.msra.mxu0 0.0
  %1246 = vmatpush.msra.mxu0 0.0
  %1247 = vmatpush.msra.mxu0 %v1228
  %1248 = vmatpush.msra.mxu0 %v1227
  %1249 = vmatpush.msra.mxu0 %v1226
  %1250 = vmatpush.msra.mxu0 %v1225
  %1251 = vmatmul.f32.gmra.mxu0 %v1230
  %v1252 = vpop.f32.mrf.mxu0
  %v1253 = vadd.f32 0.0, %v1252
  %1254 = vmatmul.f32.gmra.mxu0 %v1233
  %v1255 = vpop.f32.mrf.mxu0
  %v1256 = vadd.f32 0.0, %v1255
  %1257 = vdwg.mxu0
  %v1258 = vadd.f32 %v824, %v1253
  %v1259 = vadd.f32 %v825, %v1256
  %v1260 = vld [vmem:[%s39] sm:$0x1]
  %v1262 = vperm.slane %v1260, 0
  %v1264 = vadd.f32 %v1258, %v1262
  %v1265 = vadd.f32 %v1259, %v1262
  %v1266 = vld [vmem:[%s41] sm:$0x1]
  %v1267 = vld [vmem:[%s43] sm:$0x1]
  %v1268 = vsel %vm211, %v1264, 0.0
  %1269 = vadd.xlane.f32.xlu0 %v1268
  %v1270 = vpop.xlane.xlu0 %1269
  %v1271 = vsel %vm211, %v1265, 0.0
  %1272 = vadd.xlane.f32.xlu0 %v1271
  %v1273 = vpop.xlane.xlu0 %1272
  %v1274 = vmul.f32 %v1270, %v224
  %v1275 = vmul.f32 %v1273, %v224
  %v1276 = vsub.f32 %v1264, %v1274
  %v1277 = vsub.f32 %v1265, %v1275
  %v1278 = vmul.f32 %v1276, %v1276
  %v1279 = vmul.f32 %v1277, %v1277
  %v1280 = vsel %vm211, %v1278, 0.0
  %1281 = vadd.xlane.f32.xlu0 %v1280
  %v1282 = vpop.xlane.xlu0 %1281
  %v1283 = vsel %vm211, %v1279, 0.0
  %1284 = vadd.xlane.f32.xlu0 %v1283
  %v1285 = vpop.xlane.xlu0 %1284
  %v1286 = vmul.f32 %v1282, %v224
  %v1287 = vmul.f32 %v1285, %v224
  %v1288 = vadd.f32 %v1286, 1e-05
  %v1289 = vadd.f32 %v1287, 1e-05
  %v1290 = vrsqrt.pop %v1288
  %v1291 = vmul.f32 %v1290, %v1288
  %v1292 = vmul.f32 %v1291, %v1290
  %v1293 = vmul.f32 0.5, %v1292
  %v1294 = vsub.f32 1.5, %v1293
  %v1295 = vmul.f32 %v1290, %v1294
  %vm1296 = vweird.f32 %v1288
  %vm1297 = vweird.f32 %v1290
  %vm1298 = vmor %vm1296, %vm1297
  %v1299 = vsel %vm1298, %v1290, %v1295
  %v1300 = vrsqrt.pop %v1289
  %v1301 = vmul.f32 %v1300, %v1289
  %v1302 = vmul.f32 %v1301, %v1300
  %v1303 = vmul.f32 0.5, %v1302
  %v1304 = vsub.f32 1.5, %v1303
  %v1305 = vmul.f32 %v1300, %v1304
  %vm1306 = vweird.f32 %v1289
  %vm1307 = vweird.f32 %v1300
  %vm1308 = vmor %vm1306, %vm1307
  %v1309 = vsel %vm1308, %v1300, %v1305
  %v1310 = vmul.f32 %v1276, %v1299
  %v1311 = vmul.f32 %v1277, %v1309
  %v1313 = vperm.slane %v1266, 0
  %v1315 = vmul.f32 %v1310, %v1313
  %v1316 = vmul.f32 %v1311, %v1313
  %v1318 = vperm.slane %v1267, 0
  %v1320 = vadd.f32 %v1315, %v1318
  %v1321 = vadd.f32 %v1316, %v1318
  %v1322 = vld [vmem:[%s45] sm:$0xff]
  %v1323 = vld [vmem:[%s45 + $0x8] sm:$0xff]
  %v1324 = vld [vmem:[%s45 + $0x10] sm:$0xff]
  %v1325 = vld [vmem:[%s45 + $0x18] sm:$0xff]
  %v1326 = vld [vmem:[%s47] sm:$0x1]
  %v1328 = vperm.slane %v1326, 0
  %v1331 = vsel %vm211, %v1320, 0
  %v1334 = vsel %vm211, %v1321, 0
  %1336 = vmatpush.msra.mxu0 0.0
  %1337 = vmatpush.msra.mxu0 0.0
  %1338 = vmatpush.msra.mxu0 0.0
  %1339 = vmatpush.msra.mxu0 0.0
  %1340 = vmatpush.msra.mxu0 0.0
  %1341 = vmatpush.msra.mxu0 0.0
  %1342 = vmatpush.msra.mxu0 0.0
  %1343 = vmatpush.msra.mxu0 0.0
  %1344 = vmatpush.msra.mxu0 0.0
  %1345 = vmatpush.msra.mxu0 0.0
  %1346 = vmatpush.msra.mxu0 0.0
  %1347 = vmatpush.msra.mxu0 0.0
  %1348 = vmatpush.msra.mxu0 %v1325
  %1349 = vmatpush.msra.mxu0 %v1324
  %1350 = vmatpush.msra.mxu0 %v1323
  %1351 = vmatpush.msra.mxu0 %v1322
  %1352 = vmatmul.f32.gmra.mxu0 %v1331
  %v1353 = vpop.f32.mrf.mxu0
  %v1354 = vadd.f32 %v1328, %v1353
  %1355 = vmatmul.f32.gmra.mxu0 %v1334
  %v1356 = vpop.f32.mrf.mxu0
  %v1357 = vadd.f32 %v1328, %v1356
  %1358 = vdwg.mxu0
  %v1359 = vmul.f32 %v1354, 0.5
  %v1360 = vmul.f32 %v1357, 0.5
  %v1361 = vmul.f32 %v1354, 0.044715
  %v1362 = vmul.f32 %v1357, 0.044715
  %v1363 = vmul.f32 %v1361, %v1354
  %v1364 = vmul.f32 %v1362, %v1357
  %v1365 = vmul.f32 %v1363, %v1354
  %v1366 = vmul.f32 %v1364, %v1357
  %v1367 = vadd.f32 %v1354, %v1365
  %v1368 = vadd.f32 %v1357, %v1366
  %v1369 = vmul.f32 %v1367, 0.7978846
  %v1370 = vmul.f32 %v1368, 0.7978846
  %v1371 = vtanh.pop %v1369
  %v1372 = vtanh.pop %v1370
  %v1373 = vadd.f32 %v1371, 1.0
  %v1374 = vadd.f32 %v1372, 1.0
  %v1375 = vmul.f32 %v1359, %v1373
  %v1376 = vmul.f32 %v1360, %v1374
  %v1377 = vld [vmem:[%s49] sm:$0xff]
  %v1378 = vld [vmem:[%s49 + $0x8] sm:$0xff]
  %v1379 = vld [vmem:[%s49 + $0x10] sm:$0xff]
  %v1380 = vld [vmem:[%s49 + $0x18] sm:$0xff]
  %v1381 = vld [vmem:[%s49 + $0x20] sm:$0xff]
  %v1382 = vld [vmem:[%s49 + $0x28] sm:$0xff]
  %v1383 = vld [vmem:[%s49 + $0x30] sm:$0xff]
  %v1384 = vld [vmem:[%s49 + $0x38] sm:$0xff]
  %v1385 = vld [vmem:[%s49 + $0x40] sm:$0xff]
  %v1386 = vld [vmem:[%s49 + $0x48] sm:$0xff]
  %v1387 = vld [vmem:[%s49 + $0x50] sm:$0xff]
  %v1388 = vld [vmem:[%s49 + $0x58] sm:$0xff]
  %v1389 = vld [vmem:[%s49 + $0x60] sm:$0xff]
  %v1390 = vld [vmem:[%s49 + $0x68] sm:$0xff]
  %v1391 = vld [vmem:[%s49 + $0x70] sm:$0xff]
  %v1392 = vld [vmem:[%s49 + $0x78] sm:$0xff]
  %1393 = vmatpush.msra.mxu0 %v1392
  %1394 = vmatpush.msra.mxu0 %v1391
  %1395 = vmatpush.msra.mxu0 %v1390
  %1396 = vmatpush.msra.mxu0 %v1389
  %1397 = vmatpush.msra.mxu0 %v1388
  %1398 = vmatpush.msra.mxu0 %v1387
  %1399 = vmatpush.msra.mxu0 %v1386
  %1400 = vmatpush.msra.mxu0 %v1385
  %1401 = vmatpush.msra.mxu0 %v1384
  %1402 = vmatpush.msra.mxu0 %v1383
  %1403 = vmatpush.msra.mxu0 %v1382
  %1404 = vmatpush.msra.mxu0 %v1381
  %1405 = vmatpush.msra.mxu0 %v1380
  %1406 = vmatpush.msra.mxu0 %v1379
  %1407 = vmatpush.msra.mxu0 %v1378
  %1408 = vmatpush.msra.mxu0 %v1377
  %1409 = vmatmul.f32.gmra.mxu0 %v1375
  %v1410 = vpop.f32.mrf.mxu0
  %v1411 = vadd.f32 0.0, %v1410
  %1412 = vmatmul.f32.gmra.mxu0 %v1376
  %v1413 = vpop.f32.mrf.mxu0
  %v1414 = vadd.f32 0.0, %v1413
  %1415 = vdwg.mxu0
  %v1416 = vadd.f32 %v1264, %v1411
  %v1417 = vadd.f32 %v1265, %v1414
  %v1418 = vld [vmem:[%s51] sm:$0x1]
  %v1420 = vperm.slane %v1418, 0
  %v1422 = vadd.f32 %v1416, %v1420
  %v1423 = vadd.f32 %v1417, %v1420
  %v1424 = vld [vmem:[%s53] sm:$0x1]
  %v1425 = vld [vmem:[%s55] sm:$0x1]
  %v1426 = vsel %vm211, %v1422, 0.0
  %1427 = vadd.xlane.f32.xlu0 %v1426
  %v1428 = vpop.xlane.xlu0 %1427
  %v1429 = vsel %vm211, %v1423, 0.0
  %1430 = vadd.xlane.f32.xlu0 %v1429
  %v1431 = vpop.xlane.xlu0 %1430
  %v1432 = vmul.f32 %v1428, %v224
  %v1433 = vmul.f32 %v1431, %v224
  %v1434 = vsub.f32 %v1422, %v1432
  %v1435 = vsub.f32 %v1423, %v1433
  %v1436 = vmul.f32 %v1434, %v1434
  %v1437 = vmul.f32 %v1435, %v1435
  %v1438 = vsel %vm211, %v1436, 0.0
  %1439 = vadd.xlane.f32.xlu0 %v1438
  %v1440 = vpop.xlane.xlu0 %1439
  %v1441 = vsel %vm211, %v1437, 0.0
  %1442 = vadd.xlane.f32.xlu0 %v1441
  %v1443 = vpop.xlane.xlu0 %1442
  %v1444 = vmul.f32 %v1440, %v224
  %v1445 = vmul.f32 %v1443, %v224
  %v1446 = vadd.f32 %v1444, 1e-05
  %v1447 = vadd.f32 %v1445, 1e-05
  %v1448 = vrsqrt.pop %v1446
  %v1449 = vmul.f32 %v1448, %v1446
  %v1450 = vmul.f32 %v1449, %v1448
  %v1451 = vmul.f32 0.5, %v1450
  %v1452 = vsub.f32 1.5, %v1451
  %v1453 = vmul.f32 %v1448, %v1452
  %vm1454 = vweird.f32 %v1446
  %vm1455 = vweird.f32 %v1448
  %vm1456 = vmor %vm1454, %vm1455
  %v1457 = vsel %vm1456, %v1448, %v1453
  %v1458 = vrsqrt.pop %v1447
  %v1459 = vmul.f32 %v1458, %v1447
  %v1460 = vmul.f32 %v1459, %v1458
  %v1461 = vmul.f32 0.5, %v1460
  %v1462 = vsub.f32 1.5, %v1461
  %v1463 = vmul.f32 %v1458, %v1462
  %vm1464 = vweird.f32 %v1447
  %vm1465 = vweird.f32 %v1458
  %vm1466 = vmor %vm1464, %vm1465
  %v1467 = vsel %vm1466, %v1458, %v1463
  %v1468 = vmul.f32 %v1434, %v1457
  %v1469 = vmul.f32 %v1435, %v1467
  %v1471 = vperm.slane %v1424, 0
  %v1473 = vmul.f32 %v1468, %v1471
  %v1474 = vmul.f32 %v1469, %v1471
  %v1476 = vperm.slane %v1425, 0
  %v1478 = vadd.f32 %v1473, %v1476
  %v1479 = vadd.f32 %v1474, %v1476
  %v1480 = vld [vmem:[%s57] sm:$0xff]
  %v1481 = vld [vmem:[%s57 + $0x8] sm:$0xff]
  %v1482 = vld [vmem:[%s57 + $0x10] sm:$0xff]
  %v1483 = vld [vmem:[%s57 + $0x18] sm:$0xff]
  %v1484 = vld [vmem:[%s59] sm:$0x1]
  %v1486 = vperm.slane %v1484, 0
  %v1489 = vsel %vm211, %v1478, 0
  %v1492 = vsel %vm211, %v1479, 0
  %1494 = vmatpush.msra.mxu0 0.0
  %1495 = vmatpush.msra.mxu0 0.0
  %1496 = vmatpush.msra.mxu0 0.0
  %1497 = vmatpush.msra.mxu0 0.0
  %1498 = vmatpush.msra.mxu0 0.0
  %1499 = vmatpush.msra.mxu0 0.0
  %1500 = vmatpush.msra.mxu0 0.0
  %1501 = vmatpush.msra.mxu0 0.0
  %1502 = vmatpush.msra.mxu0 0.0
  %1503 = vmatpush.msra.mxu0 0.0
  %1504 = vmatpush.msra.mxu0 0.0
  %1505 = vmatpush.msra.mxu0 0.0
  %1506 = vmatpush.msra.mxu0 %v1483
  %1507 = vmatpush.msra.mxu0 %v1482
  %1508 = vmatpush.msra.mxu0 %v1481
  %1509 = vmatpush.msra.mxu0 %v1480
  %1510 = vmatmul.f32.gmra.mxu0 %v1489
  %v1511 = vpop.f32.mrf.mxu0
  %v1512 = vadd.f32 %v1486, %v1511
  %1513 = vmatmul.f32.gmra.mxu0 %v1492
  %v1514 = vpop.f32.mrf.mxu0
  %v1515 = vadd.f32 %v1486, %v1514
  %1516 = vdwg.mxu0
  %1517 = vst [vmem:[%s61] sm:$0xff] %v1512
  %1518 = vst [vmem:[%s61 + $0x8] sm:$0xff] %v1515
  // Predicated region
  $region122: #{vit_forward.1} parent=0 // pred_check
    _
  $region123: #{vit_forward.1} parent=0 // pred_check_branch
    %1520 = sbr.rel (0) target = $region125
  $region124: #{vit_forward.1} parent=0 // pred_region
    _
  $region125: #{vit_forward.1} parent=0 // pred_fallthru
    _
  // Predicated region
  $region126: #{vit_forward.1} parent=0 // pred_check
    _
  $region127: #{vit_forward.1} parent=0 // pred_check_branch
    %1522 = sbr.rel (0) target = $region129
  $region128: #{vit_forward.1} parent=0 // pred_region
    _
  $region129: #{vit_forward.1} parent=0 // pred_fallthru
    _

</llo_original>
